<compile_context>
chip_gen: v7x
topology: tpu7x:2x2x1
jax: 0.10.0
libtpu: 0.0.40
codegen_flags: <defaults>
</compile_context>

<pallas_src>
import math
import functools

import jax
import jax.numpy as jnp
from jax.experimental import pallas as pl
from jax.experimental.pallas import tpu as pltpu


def _round_up(x, m):
    return (x + m - 1) // m * m


def _attention_kernel(q_ref, k_ref, v_ref, bias_ref,
                      wq_ref, bq_ref, wo_ref, bo_ref,
                      out_ref, attn_ref,
                      k_lin_ref, v_lin_ref, *, inv_sqrt_dk):
    BB, TQ, Dp = q_ref.shape
    _, Sp, _ = k_ref.shape

    # ---- k/v projection: ONCE per batch block, reused by every query tile ----
    @pl.when(pl.program_id(1) == 0)
    def _():
        k_proj = jnp.dot(k_ref[...].reshape(BB * Sp, Dp), wq_ref[...],
                         preferred_element_type=jnp.float32) + bq_ref[...]
        v_proj = jnp.dot(v_ref[...].reshape(BB * Sp, Dp), wq_ref[...],
                         preferred_element_type=jnp.float32) + bq_ref[...]
        k_lin_ref[...] = k_proj.reshape(BB, Sp, Dp).astype(jnp.bfloat16)
        v_lin_ref[...] = v_proj.reshape(BB, Sp, Dp).astype(jnp.bfloat16)

    # ---- q projection for this query tile (same resident MXU RHS) ----
    q_proj = jnp.dot(q_ref[...].reshape(BB * TQ, Dp), wq_ref[...],
                     preferred_element_type=jnp.float32) + bq_ref[...]
    # fold 1/sqrt(d_k) into the (smaller) query tile, once, in f32
    q_lin = (q_proj * jnp.float32(inv_sqrt_dk)).reshape(BB, TQ, Dp)

    # ---- scores + additive mask + softmax (elementwise math stays f32) ----
    scores = jnp.einsum('bqd,bkd->bqk',
                        q_lin.astype(jnp.bfloat16),
                        k_lin_ref[...],
                        preferred_element_type=jnp.float32)    # (BB, TQ, Sp)
    scores = scores + bias_ref[...]                            # (BB, 1, Sp)

    m = jnp.max(scores, axis=-1, keepdims=True)
    e = jnp.exp(scores - m)
    denom = jnp.sum(e, axis=-1, keepdims=True)
    attn = e * pl.reciprocal(denom, approx=True)               # EUP reciprocal
    attn_bf16 = attn.astype(jnp.bfloat16)
    attn_ref[...] = attn_bf16                                  # bf16 writeback

    # ---- context + output projection ----
    ctx = jnp.einsum('bqk,bkd->bqd', attn_bf16, v_lin_ref[...],
                     preferred_element_type=jnp.float32)       # (BB, TQ, Dp)
    out = jnp.dot(ctx.reshape(BB * TQ, Dp).astype(jnp.bfloat16), wo_ref[...],
                  preferred_element_type=jnp.float32) + bo_ref[...]
    out_ref[...] = out.reshape(BB, TQ, Dp)


def attention_forward(q, k, v, mask, params):
    """q, k, v: (B, S, D) float32; mask: (B, S) (1=keep, 0=mask).

    Returns (output (B,S,D) f32, attn_weights (B,S,S) bf16)."""
    B, S, D = q.shape
    d_k = D

    # lane-dense padding
    Dp = _round_up(D, 128)
    Sp = _round_up(S, 128)

    # Query tile: multiples of 128 (lane-dense).  Capped at 256 so the live
    # (BB, TQ, Sp) score / attn tiles stay modest even on v7x's 64 MiB VMEM.
    # (On v5e/v6e with 128 MiB physical VMEM TQ=512 is viable for large Sp.)
    TQ = 256 if Sp % 256 == 0 else 128
    TQ = min(TQ, Sp)

    # Batch-block packing: largest BB with B % BB == 0, but keep B // BB >= 2
    # whenever possible so both v7x TensorCores get a batch block on the
    # "parallel" axis.
    bb_cap = max(1, 256 // TQ)
    candidates = [c for c in range(min(B, bb_cap), 0, -1) if B % c == 0]
    BB = candidates[0]
    for c in candidates:
        if B // c >= 2:
            BB = c
            break

    def pad3(x):
        return jnp.pad(x, ((0, 0), (0, Sp - S), (0, Dp - D)))

    q_p = pad3(q).astype(jnp.bfloat16)
    k_p = pad3(k).astype(jnp.bfloat16)
    v_p = pad3(v).astype(jnp.bfloat16)

    # additive mask bias: 0 where mask==1, -1e9 where mask==0 or key padding.
    # NOTE: for a fully-masked row the reference yields a uniform softmax while
    # the additive form yields softmax of the raw scores; the driver guarantees
    # >= 1 valid key per batch so the outputs match.
    key_keep = jnp.pad(mask.astype(jnp.float32), ((0, 0), (0, Sp - S)))
    bias = jnp.where(key_keep[:, None, :] > 0, 0.0,
                     -1000000000.0).astype(jnp.float32)          # (B, 1, Sp)

    # weights pre-transposed to (in, out) and padded; bf16 for the MXU
    def pad_w(w):
        wt = jnp.transpose(w)
        return jnp.pad(wt, ((0, Dp - D), (0, Dp - D))).astype(jnp.bfloat16)

    def pad_b(b):
        return jnp.pad(b, (0, Dp - D)).astype(jnp.float32).reshape(1, Dp)

    wq_t = pad_w(params["wq"])
    bq_p = pad_b(params["bq"])
    wo_t = pad_w(params["wo"])
    bo_p = pad_b(params["bo"])

    kernel = functools.partial(_attention_kernel,
                               inv_sqrt_dk=1.0 / math.sqrt(d_k))

    grid = (B // BB, Sp // TQ)

    grid_spec = pltpu.PrefetchScalarGridSpec(
        num_scalar_prefetch=0,
        grid=grid,
        in_specs=[
            pl.BlockSpec((BB, TQ, Dp), lambda b, t: (b, t, 0)),   # q tile
            pl.BlockSpec((BB, Sp, Dp), lambda b, t: (b, 0, 0)),   # k (full S, const over t)
            pl.BlockSpec((BB, Sp, Dp), lambda b, t: (b, 0, 0)),   # v (full S, const over t)
            pl.BlockSpec((BB, 1, Sp), lambda b, t: (b, 0, 0)),    # mask bias
            pl.BlockSpec((Dp, Dp), lambda b, t: (0, 0)),          # Wq^T
            pl.BlockSpec((1, Dp), lambda b, t: (0, 0)),           # bq
            pl.BlockSpec((Dp, Dp), lambda b, t: (0, 0)),          # Wo^T
            pl.BlockSpec((1, Dp), lambda b, t: (0, 0)),           # bo
        ],
        out_specs=[
            pl.BlockSpec((BB, TQ, Dp), lambda b, t: (b, t, 0)),   # output (f32)
            pl.BlockSpec((BB, TQ, Sp), lambda b, t: (b, t, 0)),   # attn (bf16)
        ],
        scratch_shapes=[
            pltpu.VMEM((BB, Sp, Dp), jnp.bfloat16),   # k_lin, persists over t
            pltpu.VMEM((BB, Sp, Dp), jnp.bfloat16),   # v_lin, persists over t
        ],
    )

    out_shapes = (
        jax.ShapeDtypeStruct((B, Sp, Dp), jnp.float32),
        jax.ShapeDtypeStruct((B, Sp, Sp), jnp.bfloat16),
    )

    # Each q/k/v row is projected exactly once (k/v cached in scratch), plus
    # scores, context and the output projection.
    flops = 2 * B * (4 * Sp * Dp * Dp + 2 * Sp * Sp * Dp)
    bytes_accessed = (3 * B * Sp * Dp * 2        # bf16 q/k/v in
                      + 2 * Dp * Dp * 2          # bf16 weights
                      + 2 * Dp * 4               # f32 biases
                      + B * Sp * 4               # mask bias
                      + B * Sp * Dp * 4          # f32 output
                      + B * Sp * Sp * 2)         # bf16 attention weights
    cost = pl.CostEstimate(flops=int(flops),
                           transcendentals=int(B * Sp * Sp),
                           bytes_accessed=int(bytes_accessed))

    # Scoped-VMEM limit: 48 MiB is safe on every generation (v7x physical is
    # 64 MiB); give v5e/v6e (128 MiB physical) more pipeline headroom.
    vmem_limit = 48 * 1024 * 1024
    try:
        kind = jax.devices()[0].device_kind.lower()
        if ("v5" in kind) or ("v6" in kind):
            vmem_limit = 96 * 1024 * 1024
    except Exception:
        pass

    out_p, attn_p = pl.pallas_call(
        kernel,
        out_shape=out_shapes,
        grid_spec=grid_spec,
        compiler_params=pltpu.CompilerParams(
            # batch axis parallel (megacore / v7x 2-TC), query-tile axis
            # arbitrary so the k/v scratch computed at t==0 is reused.
            dimension_semantics=("parallel", "arbitrary"),
            vmem_limit_bytes=vmem_limit,
        ),
        cost_estimate=cost,
    )(q_p, k_p, v_p, bias, wq_t, bq_p, wo_t, bo_p)

    # attention weights are returned in bf16 (halves HBM writeback); callers
    # that need f32-exact rows can cast, at the cost of the saved bandwidth.
    return out_p[:, :S, :D], attn_p[:, :S, :S]


def init_params(key, d_model):
    """Deterministic init mimicking nn.Linear's uniform(-1/sqrt(in), 1/sqrt(in))."""
    bound = 1.0 / math.sqrt(d_model)
    keys = jax.random.split(key, 8)

    def u(k, shape):
        return jax.random.uniform(k, shape, jnp.float32, -bound, bound)

    return {
        # q_linear (used for q, k and v projections in forward)
        "wq": u(keys[0], (d_model, d_model)),
        "bq": u(keys[1], (d_model,)),
        # k_linear / v_linear exist in __init__ but are unused in forward.
        "wk": u(keys[2], (d_model, d_model)),
        "bk": u(keys[3], (d_model,)),
        "wv": u(keys[4], (d_model, d_model)),
        "bv": u(keys[5], (d_model,)),
        # out linear
        "wo": u(keys[6], (d_model, d_model)),
        "bo": u(keys[7], (d_model,)),
    }


def reference_forward(q, k, v, mask, params):
    """Pure-JAX (f32) reference mirroring the PyTorch forward exactly."""
    wq, bq, wo, bo = params["wq"], params["bq"], params["wo"], params["bo"]
    d_k = q.shape[-1]
    ql = q @ wq.T + bq
    kl = k @ wq.T + bq
    vl = v @ wq.T + bq
    w = jnp.matmul(ql, jnp.swapaxes(kl, 1, 2) / math.sqrt(d_k))
    m = mask[:, None, :]
    w = jnp.where(m == 0, -1000000000.0, w)
    nw = jax.nn.softmax(w, axis=-1)
    out = jnp.matmul(nw, vl)
    out = out @ wo.T + bo
    return out, nw


if __name__ == "__main__":
    B, S, D = 2, 8, 32   # small shapes consistent with the module (d_model=D)

    key = jax.random.PRNGKey(0)
    kp, kq, kk, kv, km = jax.random.split(key, 5)

    params = init_params(kp, D)
    q = jax.random.normal(kq, (B, S, D), jnp.float32)
    k = jax.random.normal(kk, (B, S, D), jnp.float32)
    v = jax.random.normal(kv, (B, S, D), jnp.float32)
    # Mask: 1 = keep, 0 = masked.  Shape (B, S) like the PyTorch usage.
    mask = (jax.random.uniform(km, (B, S)) > 0.2).astype(jnp.int32)
    # Ensure at least one valid key position per batch (see additive-mask note).
    mask = mask.at[:, 0].set(1)

    out, attn = attention_forward(q, k, v, mask, params)
    jax.block_until_ready((out, attn))

    ref_out, ref_attn = reference_forward(q, k, v, mask, params)
    # bf16 MXU operands with f32 accumulation (and bf16 attn output) ->
    # relaxed tolerance vs the pure-f32 reference.
    assert out.shape == ref_out.shape and attn.shape == ref_attn.shape
    assert float(jnp.max(jnp.abs(out - ref_out))) < 5e-2
    assert float(jnp.max(jnp.abs(attn.astype(jnp.float32) - ref_attn))) < 2e-2

    print("KERNEL_OK")
</pallas_src>

<mosaic_0001>
module attributes {stable_mosaic.version = 11 : i64} {
  func.func @_attention_kernel(%arg0: i32, %arg1: i32, %arg2: memref<1x128x128xbf16, #tpu.memory_space<vmem>>, %arg3: memref<1x128x128xbf16, #tpu.memory_space<vmem>>, %arg4: memref<1x128x128xbf16, #tpu.memory_space<vmem>>, %arg5: memref<1x1x128xf32, #tpu.memory_space<vmem>>, %arg6: memref<128x128xbf16, #tpu.memory_space<vmem>>, %arg7: memref<1x128xf32, #tpu.memory_space<vmem>>, %arg8: memref<128x128xbf16, #tpu.memory_space<vmem>>, %arg9: memref<1x128xf32, #tpu.memory_space<vmem>>, %arg10: memref<1x128x128xf32, #tpu.memory_space<vmem>>, %arg11: memref<1x128x128xbf16, #tpu.memory_space<vmem>>, %arg12: memref<1x128x128xbf16, #tpu.memory_space<vmem>>, %arg13: memref<1x128x128xbf16, #tpu.memory_space<vmem>>) attributes {dimension_semantics = [#tpu.dimension_semantics<parallel>, #tpu.dimension_semantics<arbitrary>], iteration_bounds = array<i64: 2, 1>, scalar_prefetch = 0 : i64, scratch_operands = 2 : i64, tpu.core_type = #tpu.core_type<tc>, window_params = [{transform_indices = @transform_0, window_bounds = array<i64: 1, 128, 128>}, {transform_indices = @transform_1, window_bounds = array<i64: 1, 128, 128>}, {transform_indices = @transform_2, window_bounds = array<i64: 1, 128, 128>}, {transform_indices = @transform_3, window_bounds = array<i64: 1, 1, 128>}, {pipeline_mode = #tpu.pipeline_mode<synchronous>, transform_indices = @transform_4, window_bounds = array<i64: 128, 128>}, {pipeline_mode = #tpu.pipeline_mode<synchronous>, transform_indices = @transform_5, window_bounds = array<i64: 1, 128>}, {pipeline_mode = #tpu.pipeline_mode<synchronous>, transform_indices = @transform_6, window_bounds = array<i64: 128, 128>}, {pipeline_mode = #tpu.pipeline_mode<synchronous>, transform_indices = @transform_7, window_bounds = array<i64: 1, 128>}, {transform_indices = @transform_8, window_bounds = array<i64: 1, 128, 128>}, {transform_indices = @transform_9, window_bounds = array<i64: 1, 128, 128>}]} {
    %c0_i32 = arith.constant 0 : i32
    %0 = arith.cmpi eq, %arg1, %c0_i32 : i32
    %1 = arith.extui %0 : i1 to i32
    %c0_i32_0 = arith.constant 0 : i32
    %2 = arith.cmpi ne, %1, %c0_i32_0 : i32
    scf.if %2 {
      %c0_32 = arith.constant 0 : index
      %c0_33 = arith.constant 0 : index
      %c0_34 = arith.constant 0 : index
      %42 = vector.load %arg3[%c0_32, %c0_33, %c0_34] : memref<1x128x128xbf16, #tpu.memory_space<vmem>>, vector<1x128x128xbf16>
      %43 = vector.shape_cast %42 : vector<1x128x128xbf16> to vector<128x128xbf16>
      %c0_35 = arith.constant 0 : index
      %c0_36 = arith.constant 0 : index
      %44 = vector.load %arg6[%c0_35, %c0_36] : memref<128x128xbf16, #tpu.memory_space<vmem>>, vector<128x128xbf16>
      %cst_37 = arith.constant dense<0.000000e+00> : vector<128x128xf32>
      %45 = tpu.matmul %43, %44, %cst_37 {dimension_numbers = #tpu.dot_dimension_numbers<[1], [0], [0], [1], [0, 0, 1, 1], [], []>} : vector<128x128xbf16>, vector<128x128xbf16>, vector<128x128xf32> -> vector<128x128xf32>
      %c0_38 = arith.constant 0 : index
      %c0_39 = arith.constant 0 : index
      %46 = vector.load %arg7[%c0_38, %c0_39] : memref<1x128xf32, #tpu.memory_space<vmem>>, vector<1x128xf32>
      %47 = vector.broadcast %46 : vector<1x128xf32> to vector<128x128xf32>
      %48 = arith.addf %45, %47 : vector<128x128xf32>
      %c0_40 = arith.constant 0 : index
      %c0_41 = arith.constant 0 : index
      %c0_42 = arith.constant 0 : index
      %49 = vector.load %arg4[%c0_40, %c0_41, %c0_42] : memref<1x128x128xbf16, #tpu.memory_space<vmem>>, vector<1x128x128xbf16>
      %50 = vector.shape_cast %49 : vector<1x128x128xbf16> to vector<128x128xbf16>
      %c0_43 = arith.constant 0 : index
      %c0_44 = arith.constant 0 : index
      %51 = vector.load %arg6[%c0_43, %c0_44] : memref<128x128xbf16, #tpu.memory_space<vmem>>, vector<128x128xbf16>
      %cst_45 = arith.constant dense<0.000000e+00> : vector<128x128xf32>
      %52 = tpu.matmul %50, %51, %cst_45 {dimension_numbers = #tpu.dot_dimension_numbers<[1], [0], [0], [1], [0, 0, 1, 1], [], []>} : vector<128x128xbf16>, vector<128x128xbf16>, vector<128x128xf32> -> vector<128x128xf32>
      %c0_46 = arith.constant 0 : index
      %c0_47 = arith.constant 0 : index
      %53 = vector.load %arg7[%c0_46, %c0_47] : memref<1x128xf32, #tpu.memory_space<vmem>>, vector<1x128xf32>
      %54 = vector.broadcast %53 : vector<1x128xf32> to vector<128x128xf32>
      %55 = arith.addf %52, %54 : vector<128x128xf32>
      %56 = vector.shape_cast %48 : vector<128x128xf32> to vector<1x128x128xf32>
      %57 = arith.truncf %56 : vector<1x128x128xf32> to vector<1x128x128xbf16>
      %c0_48 = arith.constant 0 : index
      %c0_49 = arith.constant 0 : index
      %c0_50 = arith.constant 0 : index
      %58 = vector.load %arg12[%c0_48, %c0_49, %c0_50] : memref<1x128x128xbf16, #tpu.memory_space<vmem>>, vector<1x128x128xbf16>
      tpu.vector_store %arg12[%c0_48, %c0_49, %c0_50], %57 {strides = array<i32>} : memref<1x128x128xbf16, #tpu.memory_space<vmem>>, vector<1x128x128xbf16>,
      %59 = vector.shape_cast %55 : vector<128x128xf32> to vector<1x128x128xf32>
      %60 = arith.truncf %59 : vector<1x128x128xf32> to vector<1x128x128xbf16>
      %c0_51 = arith.constant 0 : index
      %c0_52 = arith.constant 0 : index
      %c0_53 = arith.constant 0 : index
      %61 = vector.load %arg13[%c0_51, %c0_52, %c0_53] : memref<1x128x128xbf16, #tpu.memory_space<vmem>>, vector<1x128x128xbf16>
      tpu.vector_store %arg13[%c0_51, %c0_52, %c0_53], %60 {strides = array<i32>} : memref<1x128x128xbf16, #tpu.memory_space<vmem>>, vector<1x128x128xbf16>,
    } else {
    }
    %c0 = arith.constant 0 : index
    %c0_1 = arith.constant 0 : index
    %c0_2 = arith.constant 0 : index
    %3 = vector.load %arg2[%c0, %c0_1, %c0_2] : memref<1x128x128xbf16, #tpu.memory_space<vmem>>, vector<1x128x128xbf16>
    %4 = vector.shape_cast %3 : vector<1x128x128xbf16> to vector<128x128xbf16>
    %c0_3 = arith.constant 0 : index
    %c0_4 = arith.constant 0 : index
    %5 = vector.load %arg6[%c0_3, %c0_4] : memref<128x128xbf16, #tpu.memory_space<vmem>>, vector<128x128xbf16>
    %cst = arith.constant dense<0.000000e+00> : vector<128x128xf32>
    %6 = tpu.matmul %4, %5, %cst {dimension_numbers = #tpu.dot_dimension_numbers<[1], [0], [0], [1], [0, 0, 1, 1], [], []>} : vector<128x128xbf16>, vector<128x128xbf16>, vector<128x128xf32> -> vector<128x128xf32>
    %c0_5 = arith.constant 0 : index
    %c0_6 = arith.constant 0 : index
    %7 = vector.load %arg7[%c0_5, %c0_6] : memref<1x128xf32, #tpu.memory_space<vmem>>, vector<1x128xf32>
    %8 = vector.broadcast %7 : vector<1x128xf32> to vector<128x128xf32>
    %9 = arith.addf %6, %8 : vector<128x128xf32>
    %cst_7 = arith.constant 0.176776692 : f32
    %10 = vector.broadcast %cst_7 : f32 to vector<128x128xf32>
    %11 = arith.mulf %9, %10 : vector<128x128xf32>
    %12 = vector.shape_cast %11 : vector<128x128xf32> to vector<1x128x128xf32>
    %13 = arith.truncf %12 : vector<1x128x128xf32> to vector<1x128x128xbf16>
    %c0_8 = arith.constant 0 : index
    %c0_9 = arith.constant 0 : index
    %c0_10 = arith.constant 0 : index
    %14 = vector.load %arg12[%c0_8, %c0_9, %c0_10] : memref<1x128x128xbf16, #tpu.memory_space<vmem>>, vector<1x128x128xbf16>
    "tpu.trace_start"() <{level = 10 : i32, message = "bqd,bkd->bqk"}> : () -> ()
    %cst_11 = arith.constant dense<0.000000e+00> : vector<1x128x128xf32>
    %15 = tpu.matmul %13, %14, %cst_11 {dimension_numbers = #tpu.dot_dimension_numbers<[2], [2], [1], [1], [0, 0, 0, 1, 1, 1], [0], [0]>} : vector<1x128x128xbf16>, vector<1x128x128xbf16>, vector<1x128x128xf32> -> vector<1x128x128xf32>
    "tpu.trace_stop"() : () -> ()
    %c0_12 = arith.constant 0 : index
    %c0_13 = arith.constant 0 : index
    %c0_14 = arith.constant 0 : index
    %16 = vector.load %arg5[%c0_12, %c0_13, %c0_14] : memref<1x1x128xf32, #tpu.memory_space<vmem>>, vector<1x1x128xf32>
    %17 = vector.broadcast %16 : vector<1x1x128xf32> to vector<1x128x128xf32>
    %18 = arith.addf %15, %17 : vector<1x128x128xf32>
    %cst_15 = arith.constant dense<0xFF800000> : vector<1x128xf32>
    %19 = vector.multi_reduction <maximumf>, %18, %cst_15 [2] : vector<1x128x128xf32> to vector<1x128xf32>
    %20 = vector.shape_cast %19 : vector<1x128xf32> to vector<1x128x1xf32>
    %21 = vector.broadcast %20 : vector<1x128x1xf32> to vector<1x128x128xf32>
    %22 = arith.subf %18, %21 : vector<1x128x128xf32>
    %23 = math.exp %22 : vector<1x128x128xf32>
    %cst_16 = arith.constant dense<0.000000e+00> : vector<1x128xf32>
    %24 = vector.multi_reduction <add>, %23, %cst_16 [2] : vector<1x128x128xf32> to vector<1x128xf32>
    %25 = vector.shape_cast %24 : vector<1x128xf32> to vector<1x128x1xf32>
    %26 = tpu.reciprocal %25 {approx = true} : vector<1x128x1xf32> -> vector<1x128x1xf32>
    %27 = vector.broadcast %26 : vector<1x128x1xf32> to vector<1x128x128xf32>
    %28 = arith.mulf %23, %27 : vector<1x128x128xf32>
    %29 = arith.truncf %28 : vector<1x128x128xf32> to vector<1x128x128xbf16>
    %c0_17 = arith.constant 0 : index
    %c0_18 = arith.constant 0 : index
    %c0_19 = arith.constant 0 : index
    %30 = vector.load %arg11[%c0_17, %c0_18, %c0_19] : memref<1x128x128xbf16, #tpu.memory_space<vmem>>, vector<1x128x128xbf16>
    tpu.vector_store %arg11[%c0_17, %c0_18, %c0_19], %29 {strides = array<i32>} : memref<1x128x128xbf16, #tpu.memory_space<vmem>>, vector<1x128x128xbf16>,
    %c0_20 = arith.constant 0 : index
    %c0_21 = arith.constant 0 : index
    %c0_22 = arith.constant 0 : index
    %31 = vector.load %arg13[%c0_20, %c0_21, %c0_22] : memref<1x128x128xbf16, #tpu.memory_space<vmem>>, vector<1x128x128xbf16>
    "tpu.trace_start"() <{level = 10 : i32, message = "bqk,bkd->bqd"}> : () -> ()
    %cst_23 = arith.constant dense<0.000000e+00> : vector<1x128x128xf32>
    %32 = tpu.matmul %29, %31, %cst_23 {dimension_numbers = #tpu.dot_dimension_numbers<[2], [1], [1], [2], [0, 0, 0, 1, 1, 2], [0], [0]>} : vector<1x128x128xbf16>, vector<1x128x128xbf16>, vector<1x128x128xf32> -> vector<1x128x128xf32>
    "tpu.trace_stop"() : () -> ()
    %33 = vector.shape_cast %32 : vector<1x128x128xf32> to vector<128x128xf32>
    %34 = arith.truncf %33 : vector<128x128xf32> to vector<128x128xbf16>
    %c0_24 = arith.constant 0 : index
    %c0_25 = arith.constant 0 : index
    %35 = vector.load %arg8[%c0_24, %c0_25] : memref<128x128xbf16, #tpu.memory_space<vmem>>, vector<128x128xbf16>
    %cst_26 = arith.constant dense<0.000000e+00> : vector<128x128xf32>
    %36 = tpu.matmul %34, %35, %cst_26 {dimension_numbers = #tpu.dot_dimension_numbers<[1], [0], [0], [1], [0, 0, 1, 1], [], []>} : vector<128x128xbf16>, vector<128x128xbf16>, vector<128x128xf32> -> vector<128x128xf32>
    %c0_27 = arith.constant 0 : index
    %c0_28 = arith.constant 0 : index
    %37 = vector.load %arg9[%c0_27, %c0_28] : memref<1x128xf32, #tpu.memory_space<vmem>>, vector<1x128xf32>
    %38 = vector.broadcast %37 : vector<1x128xf32> to vector<128x128xf32>
    %39 = arith.addf %36, %38 : vector<128x128xf32>
    %40 = vector.shape_cast %39 : vector<128x128xf32> to vector<1x128x128xf32>
    %c0_29 = arith.constant 0 : index
    %c0_30 = arith.constant 0 : index
    %c0_31 = arith.constant 0 : index
    %41 = vector.load %arg10[%c0_29, %c0_30, %c0_31] : memref<1x128x128xf32, #tpu.memory_space<vmem>>, vector<1x128x128xf32>
    tpu.vector_store %arg10[%c0_29, %c0_30, %c0_31], %40 {strides = array<i32>} : memref<1x128x128xf32, #tpu.memory_space<vmem>>, vector<1x128x128xf32>,
    return
  }
  func.func @transform_0(%arg0: i32, %arg1: i32) -> (i32, i32, i32) {
    %c0_i32 = arith.constant 0 : i32
    %c0_i32_0 = arith.constant 0 : i32
    return %arg0, %arg1, %c0_i32 : i32, i32, i32
  }
  func.func @transform_1(%arg0: i32, %arg1: i32) -> (i32, i32, i32) {
    %c0_i32 = arith.constant 0 : i32
    %c0_i32_0 = arith.constant 0 : i32
    %c0_i32_1 = arith.constant 0 : i32
    return %arg0, %c0_i32, %c0_i32_0 : i32, i32, i32
  }
  func.func @transform_2(%arg0: i32, %arg1: i32) -> (i32, i32, i32) {
    %c0_i32 = arith.constant 0 : i32
    %c0_i32_0 = arith.constant 0 : i32
    %c0_i32_1 = arith.constant 0 : i32
    return %arg0, %c0_i32, %c0_i32_0 : i32, i32, i32
  }
  func.func @transform_3(%arg0: i32, %arg1: i32) -> (i32, i32, i32) {
    %c0_i32 = arith.constant 0 : i32
    %c0_i32_0 = arith.constant 0 : i32
    %c0_i32_1 = arith.constant 0 : i32
    return %arg0, %c0_i32, %c0_i32_0 : i32, i32, i32
  }
  func.func @transform_4(%arg0: i32, %arg1: i32) -> (i32, i32) {
    %c0_i32 = arith.constant 0 : i32
    %c0_i32_0 = arith.constant 0 : i32
    %c0_i32_1 = arith.constant 0 : i32
    return %c0_i32, %c0_i32_0 : i32, i32
  }
  func.func @transform_5(%arg0: i32, %arg1: i32) -> (i32, i32) {
    %c0_i32 = arith.constant 0 : i32
    %c0_i32_0 = arith.constant 0 : i32
    %c0_i32_1 = arith.constant 0 : i32
    return %c0_i32, %c0_i32_0 : i32, i32
  }
  func.func @transform_6(%arg0: i32, %arg1: i32) -> (i32, i32) {
    %c0_i32 = arith.constant 0 : i32
    %c0_i32_0 = arith.constant 0 : i32
    %c0_i32_1 = arith.constant 0 : i32
    return %c0_i32, %c0_i32_0 : i32, i32
  }
  func.func @transform_7(%arg0: i32, %arg1: i32) -> (i32, i32) {
    %c0_i32 = arith.constant 0 : i32
    %c0_i32_0 = arith.constant 0 : i32
    %c0_i32_1 = arith.constant 0 : i32
    return %c0_i32, %c0_i32_0 : i32, i32
  }
  func.func @transform_8(%arg0: i32, %arg1: i32) -> (i32, i32, i32) {
    %c0_i32 = arith.constant 0 : i32
    %c0_i32_0 = arith.constant 0 : i32
    return %arg0, %arg1, %c0_i32 : i32, i32, i32
  }
  func.func @transform_9(%arg0: i32, %arg1: i32) -> (i32, i32, i32) {
    %c0_i32 = arith.constant 0 : i32
    %c0_i32_0 = arith.constant 0 : i32
    return %arg0, %arg1, %c0_i32 : i32, i32, i32
  }
}

</mosaic_0001>

<llo_original>
// kernel: tpu_custom_call.1
$region0: #{tpu_custom_call.1}
  #allocation0 [shape = 'u32[]', space=smem, size = 0x4, offset = 0x4, fixed_abs, tag = 'smem constant byte address 0x4 - core index']
  #allocation1 [shape = 'u32[144,128]{1,0:T(1,128)}', space=vmem, size = 0x12000, scoped, tag = 'internal scratch']
  #allocation2 [shape = 'bf16[1,128,128]{2,1,0:T(16,128)(2,1)}', space=vmem, size = 0x8000, scoped, tag = 'scratch operand']
  #allocation3 [shape = 'bf16[1,128,128]{2,1,0:T(16,128)(2,1)}', space=vmem, size = 0x8000, scoped, tag = 'scratch operand']
  %s0 = inlined_call_operand.hbm [shape: bf16[2,128,128], index: 0, kind: input, shape index: {}]
  %s1 = inlined_call_operand.hbm [shape: bf16[2,128,128], index: 1, kind: input, shape index: {}]
  %s2 = inlined_call_operand.hbm [shape: bf16[2,128,128], index: 2, kind: input, shape index: {}]
  %s3 = inlined_call_operand.vmem [shape: f32[2,1,128], index: 3, kind: input, shape index: {}]
  %s4 = inlined_call_operand.hbm [shape: bf16[128,128], index: 4, kind: input, shape index: {}]
  %s5 = inlined_call_operand.vmem [shape: f32[1,128], index: 5, kind: input, shape index: {}]
  %s6 = inlined_call_operand.hbm [shape: bf16[128,128], index: 6, kind: input, shape index: {}]
  %s7 = inlined_call_operand.vmem [shape: f32[1,128], index: 7, kind: input, shape index: {}]
  %s8 = inlined_call_operand.hbm [shape: f32[2,128,128], index: 8, kind: output, shape index: {0}]
  %s9 = inlined_call_operand.hbm [shape: bf16[2,128,128], index: 9, kind: output, shape index: {1}]
  %10 = xla_tuple %s8, %s9
  %s11 = sld [smem:[#allocation0]]
  $region97: #{tpu_custom_call.1} parent=0
    _
  %s13 = ssub.s32 1, %s11
  %s14 = scalar_select 0, %s13, %s11
  $region1: #{tpu_custom_call.1} parent=0
    #allocation4 [shape = 'u8[65536]{0}', space=vmem, size = 0x10000, scoped, tag = 'input window, operand 0']
    #allocation5 [shape = 's32[2]{0}', space=sflag, size = 0x8, scoped, tag = 'scoped memory for tpu_custom_call.1']
    #allocation6 [shape = 's32[2]{0}', space=sflag, size = 0x8, scoped, tag = 'scoped memory for tpu_custom_call.1']
    #allocation7 [shape = 'u8[65536]{0}', space=vmem, size = 0x10000, scoped, tag = 'input window, operand 1']
    #allocation8 [shape = 's32[2]{0}', space=sflag, size = 0x8, scoped, tag = 'scoped memory for tpu_custom_call.1']
    #allocation9 [shape = 'u8[65536]{0}', space=vmem, size = 0x10000, scoped, tag = 'input window, operand 2']
    #allocation10 [shape = 'u8[32768]{0}', space=vmem, size = 0x8000, scoped, tag = 'input window, operand 4, single buffered']
    #allocation11 [shape = 's32[1]{0}', space=sflag, size = 0x4, scoped, tag = 'scoped memory for tpu_custom_call.1']
    #allocation12 [shape = 'u8[32768]{0}', space=vmem, size = 0x8000, scoped, tag = 'input window, operand 6, single buffered']
    #allocation13 [shape = 'u8[131072]{0}', space=vmem, size = 0x20000, scoped, tag = 'output window, operand 0']
    #allocation14 [shape = 'u8[65536]{0}', space=vmem, size = 0x10000, scoped, tag = 'output window, operand 1']
    #allocation15 [shape = 's32[2]{0}', space=sflag, size = 0x8, scoped, tag = 'scoped memory for tpu_custom_call.1']
    %15 = vsyncpa [#allocation5], 0
    %s16 = scalar_lea.sflag [#allocation5], 1
    %17 = vsyncpa %s16, 0
    %18 = vsyncpa [#allocation8], 0
    %s19 = scalar_lea.sflag [#allocation8], 1
    %20 = vsyncpa %s19, 0
    %21 = vsyncpa [#allocation11], 0
    %22 = vsyncpa [#allocation6], 0
    %s23 = scalar_lea.sflag [#allocation6], 1
    %24 = vsyncpa %s23, 0
    %25 = vsyncpa [#allocation15], 0
    %s26 = scalar_lea.sflag [#allocation15], 1
    %27 = vsyncpa %s26, 0
    loop: start=0, step=1, limit=4
    $region2: #{tpu_custom_call.1} parent=1 // loop_pre_header
      _
    $region3: #{tpu_custom_call.1} parent=1 // loop_header
      %s29 = sphi 0, %s33
      %p30 = scmp.ge.s32.totalorder %s29, 4
      %s36 = sphi 0, %s48
      %s37 = sphi 0, %s44
      %s38 = sphi 0, %s36
      %s39 = sphi 0, %s37
      %s40 = sphi 0, %s38
      %s41 = sphi 0, %s39
      %s53 = sphi 0, %s55
      %s56 = sphi 0, %s53
      %s57 = sphi 0, %s56
      %s73 = sphi 0, %s57
      %s79 = sphi 0, %s81
      %s82 = sphi 0, %s79
      %s83 = sphi 0, %s82
      %s99 = sphi 0, %s83
      %s105 = sphi 0, %s107
      %s108 = sphi 0, %s105
      %s109 = sphi 0, %s108
      %s125 = sphi 0, %s109
      %s131 = sphi 0, %s133
      %s134 = sphi 0, %s131
      %s135 = sphi 0, %s134
      %s151 = sphi 0, %s135
      %s155 = sphi 0, %s155
      %s157 = sphi 0, %s155
      %s158 = sphi 0, %s157
      %s172 = sphi 0, %s158
      %s176 = sphi 0, %s176
      %s178 = sphi 0, %s176
      %s179 = sphi 0, %s178
      %s193 = sphi 0, %s179
      %s197 = sphi 0, %s197
      %s199 = sphi 0, %s197
      %s200 = sphi 0, %s199
      %s214 = sphi 0, %s200
      %s218 = sphi 0, %s218
      %s220 = sphi 0, %s218
      %s221 = sphi 0, %s220
      %s235 = sphi 0, %s221
      %s243 = sphi 0, %s245
      %s246 = sphi 0, %s243
      %s247 = sphi 0, %s246
      %s263 = sphi 0, %s247
      %s271 = sphi 0, %s273
      %s274 = sphi 0, %s271
      %s275 = sphi 0, %s274
      %s291 = sphi 0, %s275
    $region4: #{tpu_custom_call.1} parent=1 // loop_header_branch
      %32 = sbr.rel (%p30) target = $region8
    $region5: #{tpu_custom_call.1} parent=1 // loop_body
      %s34 = ssub.s32 %s29, 1
      %s35 = ssub.s32 %s29, 2
      %s42 = sadd.s32 1, %s37
      %p43 = scmp.ge.s32.totalorder %s42, 1
      %s44 = scalar_select %p43, 0, %s42
      %s45 = sadd.s32 1, %s36
      %s46 = scalar_select %p43, %s45, %s36
      %p47 = scmp.ge.s32.totalorder %s46, 2
      %s48 = scalar_select %p47, 0, %s46
      %s49 = ssub.s32 %s36, %s48
      %s50 = ssub.s32 %s37, %s44
      %s51 = sor.u32 %s49, %s50
      %p52 = scmp.eq.s32.totalorder %s51, 0
      %s54 = sadd.s32 %s53, 1
      %s55 = scalar_select %p52, %s53, %s54
      %p58 = pneg %p52
      %p59 = scmp.eq.s32.totalorder %s29, 1
      %p60 = por %p58, %p59
      %p61 = scmp.ne.s32.totalorder %s53, %s56
      %p62 = scmp.eq.s32.totalorder %s29, 0
      %p63 = por %p61, %p62
      %p64 = scmp.ne.s32.totalorder %s53, %s56
      %p65 = scmp.eq.s32.totalorder %s34, 1
      %p66 = por %p64, %p65
      %p67 = scmp.ne.s32.totalorder %s56, %s57
      %p68 = scmp.eq.s32.totalorder %s34, 0
      %p69 = por %p67, %p68
      %p70 = scmp.ne.s32.totalorder %s56, %s57
      %p71 = scmp.eq.s32.totalorder %s35, 1
      %p72 = por %p70, %p71
      %p74 = scmp.ne.s32.totalorder %s57, %s73
      %p75 = scmp.eq.s32.totalorder %s35, 0
      %p76 = por %p74, %p75
      %s77 = ssub.s32 %s36, %s48
      %p78 = scmp.eq.s32.totalorder %s77, 0
      %s80 = sadd.s32 %s79, 1
      %s81 = scalar_select %p78, %s79, %s80
      %p84 = pneg %p78
      %p85 = scmp.eq.s32.totalorder %s29, 1
      %p86 = por %p84, %p85
      %p87 = scmp.ne.s32.totalorder %s79, %s82
      %p88 = scmp.eq.s32.totalorder %s29, 0
      %p89 = por %p87, %p88
      %p90 = scmp.ne.s32.totalorder %s79, %s82
      %p91 = scmp.eq.s32.totalorder %s34, 1
      %p92 = por %p90, %p91
      %p93 = scmp.ne.s32.totalorder %s82, %s83
      %p94 = scmp.eq.s32.totalorder %s34, 0
      %p95 = por %p93, %p94
      %p96 = scmp.ne.s32.totalorder %s82, %s83
      %p97 = scmp.eq.s32.totalorder %s35, 1
      %p98 = por %p96, %p97
      %p100 = scmp.ne.s32.totalorder %s83, %s99
      %p101 = scmp.eq.s32.totalorder %s35, 0
      %p102 = por %p100, %p101
      %s103 = ssub.s32 %s36, %s48
      %p104 = scmp.eq.s32.totalorder %s103, 0
      %s106 = sadd.s32 %s105, 1
      %s107 = scalar_select %p104, %s105, %s106
      %p110 = pneg %p104
      %p111 = scmp.eq.s32.totalorder %s29, 1
      %p112 = por %p110, %p111
      %p113 = scmp.ne.s32.totalorder %s105, %s108
      %p114 = scmp.eq.s32.totalorder %s29, 0
      %p115 = por %p113, %p114
      %p116 = scmp.ne.s32.totalorder %s105, %s108
      %p117 = scmp.eq.s32.totalorder %s34, 1
      %p118 = por %p116, %p117
      %p119 = scmp.ne.s32.totalorder %s108, %s109
      %p120 = scmp.eq.s32.totalorder %s34, 0
      %p121 = por %p119, %p120
      %p122 = scmp.ne.s32.totalorder %s108, %s109
      %p123 = scmp.eq.s32.totalorder %s35, 1
      %p124 = por %p122, %p123
      %p126 = scmp.ne.s32.totalorder %s109, %s125
      %p127 = scmp.eq.s32.totalorder %s35, 0
      %p128 = por %p126, %p127
      %s129 = ssub.s32 %s36, %s48
      %p130 = scmp.eq.s32.totalorder %s129, 0
      %s132 = sadd.s32 %s131, 1
      %s133 = scalar_select %p130, %s131, %s132
      %p136 = pneg %p130
      %p137 = scmp.eq.s32.totalorder %s29, 1
      %p138 = por %p136, %p137
      %p139 = scmp.ne.s32.totalorder %s131, %s134
      %p140 = scmp.eq.s32.totalorder %s29, 0
      %p141 = por %p139, %p140
      %p142 = scmp.ne.s32.totalorder %s131, %s134
      %p143 = scmp.eq.s32.totalorder %s34, 1
      %p144 = por %p142, %p143
      %p145 = scmp.ne.s32.totalorder %s134, %s135
      %p146 = scmp.eq.s32.totalorder %s34, 0
      %p147 = por %p145, %p146
      %p148 = scmp.ne.s32.totalorder %s134, %s135
      %p149 = scmp.eq.s32.totalorder %s35, 1
      %p150 = por %p148, %p149
      %p152 = scmp.ne.s32.totalorder %s135, %s151
      %p153 = scmp.eq.s32.totalorder %s35, 0
      %p154 = por %p152, %p153
      %s156 = sadd.s32 %s155, 1
      %p159 = scmp.eq.s32.totalorder %s29, 1
      %p160 = scmp.ne.s32.totalorder %s155, %s157
      %p161 = scmp.eq.s32.totalorder %s29, 0
      %p162 = por %p160, %p161
      %p163 = scmp.ne.s32.totalorder %s155, %s157
      %p164 = scmp.eq.s32.totalorder %s34, 1
      %p165 = por %p163, %p164
      %p166 = scmp.ne.s32.totalorder %s157, %s158
      %p167 = scmp.eq.s32.totalorder %s34, 0
      %p168 = por %p166, %p167
      %p169 = scmp.ne.s32.totalorder %s157, %s158
      %p170 = scmp.eq.s32.totalorder %s35, 1
      %p171 = por %p169, %p170
      %p173 = scmp.ne.s32.totalorder %s158, %s172
      %p174 = scmp.eq.s32.totalorder %s35, 0
      %p175 = por %p173, %p174
      %s177 = sadd.s32 %s176, 1
      %p180 = scmp.eq.s32.totalorder %s29, 1
      %p181 = scmp.ne.s32.totalorder %s176, %s178
      %p182 = scmp.eq.s32.totalorder %s29, 0
      %p183 = por %p181, %p182
      %p184 = scmp.ne.s32.totalorder %s176, %s178
      %p185 = scmp.eq.s32.totalorder %s34, 1
      %p186 = por %p184, %p185
      %p187 = scmp.ne.s32.totalorder %s178, %s179
      %p188 = scmp.eq.s32.totalorder %s34, 0
      %p189 = por %p187, %p188
      %p190 = scmp.ne.s32.totalorder %s178, %s179
      %p191 = scmp.eq.s32.totalorder %s35, 1
      %p192 = por %p190, %p191
      %p194 = scmp.ne.s32.totalorder %s179, %s193
      %p195 = scmp.eq.s32.totalorder %s35, 0
      %p196 = por %p194, %p195
      %s198 = sadd.s32 %s197, 1
      %p201 = scmp.eq.s32.totalorder %s29, 1
      %p202 = scmp.ne.s32.totalorder %s197, %s199
      %p203 = scmp.eq.s32.totalorder %s29, 0
      %p204 = por %p202, %p203
      %p205 = scmp.ne.s32.totalorder %s197, %s199
      %p206 = scmp.eq.s32.totalorder %s34, 1
      %p207 = por %p205, %p206
      %p208 = scmp.ne.s32.totalorder %s199, %s200
      %p209 = scmp.eq.s32.totalorder %s34, 0
      %p210 = por %p208, %p209
      %p211 = scmp.ne.s32.totalorder %s199, %s200
      %p212 = scmp.eq.s32.totalorder %s35, 1
      %p213 = por %p211, %p212
      %p215 = scmp.ne.s32.totalorder %s200, %s214
      %p216 = scmp.eq.s32.totalorder %s35, 0
      %p217 = por %p215, %p216
      %s219 = sadd.s32 %s218, 1
      %p222 = scmp.eq.s32.totalorder %s29, 1
      %p223 = scmp.ne.s32.totalorder %s218, %s220
      %p224 = scmp.eq.s32.totalorder %s29, 0
      %p225 = por %p223, %p224
      %p226 = scmp.ne.s32.totalorder %s218, %s220
      %p227 = scmp.eq.s32.totalorder %s34, 1
      %p228 = por %p226, %p227
      %p229 = scmp.ne.s32.totalorder %s220, %s221
      %p230 = scmp.eq.s32.totalorder %s34, 0
      %p231 = por %p229, %p230
      %p232 = scmp.ne.s32.totalorder %s220, %s221
      %p233 = scmp.eq.s32.totalorder %s35, 1
      %p234 = por %p232, %p233
      %p236 = scmp.ne.s32.totalorder %s221, %s235
      %p237 = scmp.eq.s32.totalorder %s35, 0
      %p238 = por %p236, %p237
      %s239 = ssub.s32 %s36, %s48
      %s240 = ssub.s32 %s37, %s44
      %s241 = sor.u32 %s239, %s240
      %p242 = scmp.eq.s32.totalorder %s241, 0
      %s244 = sadd.s32 %s243, 1
      %s245 = scalar_select %p242, %s243, %s244
      %p248 = pneg %p242
      %p249 = scmp.eq.s32.totalorder %s29, 1
      %p250 = por %p248, %p249
      %p251 = scmp.ne.s32.totalorder %s243, %s246
      %p252 = scmp.eq.s32.totalorder %s29, 0
      %p253 = por %p251, %p252
      %p254 = scmp.ne.s32.totalorder %s243, %s246
      %p255 = scmp.eq.s32.totalorder %s34, 1
      %p256 = por %p254, %p255
      %p257 = scmp.ne.s32.totalorder %s246, %s247
      %p258 = scmp.eq.s32.totalorder %s34, 0
      %p259 = por %p257, %p258
      %p260 = scmp.ne.s32.totalorder %s246, %s247
      %p261 = scmp.eq.s32.totalorder %s35, 1
      %p262 = por %p260, %p261
      %p264 = scmp.ne.s32.totalorder %s247, %s263
      %p265 = scmp.eq.s32.totalorder %s35, 0
      %p266 = por %p264, %p265
      %s267 = ssub.s32 %s36, %s48
      %s268 = ssub.s32 %s37, %s44
      %s269 = sor.u32 %s267, %s268
      %p270 = scmp.eq.s32.totalorder %s269, 0
      %s272 = sadd.s32 %s271, 1
      %s273 = scalar_select %p270, %s271, %s272
      %p276 = pneg %p270
      %p277 = scmp.eq.s32.totalorder %s29, 1
      %p278 = por %p276, %p277
      %p279 = scmp.ne.s32.totalorder %s271, %s274
      %p280 = scmp.eq.s32.totalorder %s29, 0
      %p281 = por %p279, %p280
      %p282 = scmp.ne.s32.totalorder %s271, %s274
      %p283 = scmp.eq.s32.totalorder %s34, 1
      %p284 = por %p282, %p283
      %p285 = scmp.ne.s32.totalorder %s274, %s275
      %p286 = scmp.eq.s32.totalorder %s34, 0
      %p287 = por %p285, %p286
      %p288 = scmp.ne.s32.totalorder %s274, %s275
      %p289 = scmp.eq.s32.totalorder %s35, 1
      %p290 = por %p288, %p289
      %p292 = scmp.ne.s32.totalorder %s275, %s291
      %p293 = scmp.eq.s32.totalorder %s35, 0
      %p294 = por %p292, %p293
      %p295 = scmp.le.s32.totalorder 1, %s29
      %p296 = scmp.lt.s32.totalorder %s29, 3
      %p297 = pnand %p295, %p296
      %p298 = pneg %p297
      // Predicated region
      $region9: #{tpu_custom_call.1} parent=5 // pred_check
        _
      $region10: #{tpu_custom_call.1} parent=5 // pred_check_branch
        %300 = sbr.rel (%p297) target = $region12
      $region11: #{tpu_custom_call.1} parent=5 // pred_region
        %s301 = ssub.s32 %s29, 1
        // Predicated region
        $region13: #{tpu_custom_call.1} parent=11 // pred_check
          %p302 = pneg %p168
        $region14: #{tpu_custom_call.1} parent=11 // pred_check_branch
          %304 = sbr.rel (%p302) target = $region16
        $region15: #{tpu_custom_call.1} parent=11 // pred_region
          %s306 = ssub.s32 1024, 1024
          %307 = vsyncadd [#allocation11], %s306
          %s308 = sshll.u32 [#allocation10], 4
          %s309 = int_to_ptr.vmem [resolvable:$true] %s308
          %314 = dma.hbm_to_vmem [thread:$0]  %s4, 1024, %s309, [#allocation11], 64, 64, 4
        $region16: #{tpu_custom_call.1} parent=11 // pred_fallthru
          _
        // Predicated region
        $region17: #{tpu_custom_call.1} parent=11 // pred_check
          %p315 = pneg %p189
        $region18: #{tpu_custom_call.1} parent=11 // pred_check_branch
          %317 = sbr.rel (%p315) target = $region20
        $region19: #{tpu_custom_call.1} parent=11 // pred_region
          _
        $region20: #{tpu_custom_call.1} parent=11 // pred_fallthru
          _
        // Predicated region
        $region21: #{tpu_custom_call.1} parent=11 // pred_check
          %p318 = pneg %p210
        $region22: #{tpu_custom_call.1} parent=11 // pred_check_branch
          %320 = sbr.rel (%p318) target = $region24
        $region23: #{tpu_custom_call.1} parent=11 // pred_region
          %s322 = ssub.s32 1024, 1024
          %323 = vsyncadd [#allocation11], %s322
          %s324 = sshll.u32 [#allocation12], 4
          %s325 = int_to_ptr.vmem [resolvable:$true] %s324
          %330 = dma.hbm_to_vmem [thread:$0]  %s6, 1024, %s325, [#allocation11], 64, 64, 4
        $region24: #{tpu_custom_call.1} parent=11 // pred_fallthru
          _
        // Predicated region
        $region25: #{tpu_custom_call.1} parent=11 // pred_check
          %p331 = pneg %p231
        $region26: #{tpu_custom_call.1} parent=11 // pred_check_branch
          %333 = sbr.rel (%p331) target = $region28
        $region27: #{tpu_custom_call.1} parent=11 // pred_region
          _
        $region28: #{tpu_custom_call.1} parent=11 // pred_fallthru
          _
      $region12: #{tpu_custom_call.1} parent=5 // pred_fallthru
        _
      %p334 = scmp.lt.s32.totalorder %s29, 2
      // Predicated region
      $region29: #{tpu_custom_call.1} parent=5 // pred_check
        %p335 = pneg %p334
      $region30: #{tpu_custom_call.1} parent=5 // pred_check_branch
        %337 = sbr.rel (%p335) target = $region32
      $region31: #{tpu_custom_call.1} parent=5 // pred_region
        // Predicated region
        $region33: #{tpu_custom_call.1} parent=31 // pred_check
          %p338 = pneg %p63
        $region34: #{tpu_custom_call.1} parent=31 // pred_check_branch
          %340 = sbr.rel (%p338) target = $region36
        $region35: #{tpu_custom_call.1} parent=31 // pred_region
          %s341 = sand.u32 %s53, 1
          %s342 = scalar_lea.sflag [#allocation5], %s341
          %s343 = sand.u32 %s53, 1
          %s344 = smul.addr %s343, 64
          %s345 = scalar_lea.vmem [#allocation4], %s344
          %s346 = smul.u32 16, %s37
          %s348 = ssub.s32 1024, 1024
          %349 = vsyncadd %s342, %s348
          %s350 = smul.addr %s36, 16
          %s351 = sadd.s32 %s346, %s350
          %s352 = smul.addr %s351, 64
          %s353 = scalar_lea.hbm %s0, %s352
          %s354 = sshll.u32 %s345, 4
          %s355 = int_to_ptr.vmem [resolvable:$true] %s354
          %360 = dma.hbm_to_vmem [thread:$0]  %s353, 1024, %s355, %s342, 64, 64, 4
        $region36: #{tpu_custom_call.1} parent=31 // pred_fallthru
          _
        // Predicated region
        $region37: #{tpu_custom_call.1} parent=31 // pred_check
          %p361 = pneg %p89
        $region38: #{tpu_custom_call.1} parent=31 // pred_check_branch
          %363 = sbr.rel (%p361) target = $region40
        $region39: #{tpu_custom_call.1} parent=31 // pred_region
          %s364 = sand.u32 %s29, 1
          %s365 = scalar_lea.sflag [#allocation8], %s364
          %s366 = sand.u32 %s79, 1
          %s367 = smul.addr %s366, 64
          %s368 = scalar_lea.vmem [#allocation7], %s367
          %s370 = ssub.s32 1024, 1024
          %371 = vsyncadd %s365, %s370
          %s372 = smul.addr %s36, 16
          %s373 = smul.addr %s372, 64
          %s374 = scalar_lea.hbm %s1, %s373
          %s375 = sshll.u32 %s368, 4
          %s376 = int_to_ptr.vmem [resolvable:$true] %s375
          %381 = dma.hbm_to_vmem [thread:$0]  %s374, 1024, %s376, %s365, 64, 64, 4
        $region40: #{tpu_custom_call.1} parent=31 // pred_fallthru
          _
        // Predicated region
        $region41: #{tpu_custom_call.1} parent=31 // pred_check
          %p382 = pneg %p115
        $region42: #{tpu_custom_call.1} parent=31 // pred_check_branch
          %384 = sbr.rel (%p382) target = $region44
        $region43: #{tpu_custom_call.1} parent=31 // pred_region
          %s385 = sand.u32 %s29, 1
          %s386 = scalar_lea.sflag [#allocation8], %s385
          %s387 = sand.u32 %s105, 1
          %s388 = smul.addr %s387, 64
          %s389 = scalar_lea.vmem [#allocation9], %s388
          %s391 = ssub.s32 1024, 1024
          %392 = vsyncadd %s386, %s391
          %s393 = smul.addr %s36, 16
          %s394 = smul.addr %s393, 64
          %s395 = scalar_lea.hbm %s2, %s394
          %s396 = sshll.u32 %s389, 4
          %s397 = int_to_ptr.vmem [resolvable:$true] %s396
          %402 = dma.hbm_to_vmem [thread:$0]  %s395, 1024, %s397, %s386, 64, 64, 4
        $region44: #{tpu_custom_call.1} parent=31 // pred_fallthru
          _
        // Predicated region
        $region45: #{tpu_custom_call.1} parent=31 // pred_check
          %p403 = pneg %p141
        $region46: #{tpu_custom_call.1} parent=31 // pred_check_branch
          %405 = sbr.rel (%p403) target = $region48
        $region47: #{tpu_custom_call.1} parent=31 // pred_region
          %p406 = scmp.lt.s32.totalorder %s36, 1
          %s407 = scalar_select %p406, %s36, 1
          %s408 = scalar_lea.vmem %s3, %s407
        $region48: #{tpu_custom_call.1} parent=31 // pred_fallthru
          _
      $region32: #{tpu_custom_call.1} parent=5 // pred_fallthru
        _
      %p409 = scmp.le.s32.totalorder 1, %s29
      %p410 = scmp.lt.s32.totalorder %s29, 3
      %p411 = pnand %p409, %p410
      %p412 = pneg %p411
      // Predicated region
      $region49: #{tpu_custom_call.1} parent=5 // pred_check
        _
      $region50: #{tpu_custom_call.1} parent=5 // pred_check_branch
        %414 = sbr.rel (%p411) target = $region52
      $region51: #{tpu_custom_call.1} parent=5 // pred_region
        %s415 = ssub.s32 %s29, 1
        %s416 = sand.u32 %s56, 1
        %s417 = scalar_lea.sflag [#allocation5], %s416
        %s418 = sand.u32 %s56, 1
        %s419 = smul.addr %s418, 64
        %s420 = scalar_lea.vmem [#allocation4], %s419
        // Predicated region
        $region53: #{tpu_custom_call.1} parent=51 // pred_check
          %p421 = pneg %p69
        $region54: #{tpu_custom_call.1} parent=51 // pred_check_branch
          %423 = sbr.rel (%p421) target = $region56
        $region55: #{tpu_custom_call.1} parent=51 // pred_region
          %424 = dma.done %s417, 1024
        $region56: #{tpu_custom_call.1} parent=51 // pred_fallthru
          _
        %s425 = sand.u32 %s34, 1
        %s426 = scalar_lea.sflag [#allocation8], %s425
        %s427 = sand.u32 %s82, 1
        %s428 = smul.addr %s427, 64
        %s429 = scalar_lea.vmem [#allocation7], %s428
        // Predicated region
        $region57: #{tpu_custom_call.1} parent=51 // pred_check
          %p430 = pneg %p95
        $region58: #{tpu_custom_call.1} parent=51 // pred_check_branch
          %432 = sbr.rel (%p430) target = $region60
        $region59: #{tpu_custom_call.1} parent=51 // pred_region
          %433 = dma.done %s426, 1024
        $region60: #{tpu_custom_call.1} parent=51 // pred_fallthru
          _
        %s434 = sand.u32 %s34, 1
        %s435 = scalar_lea.sflag [#allocation8], %s434
        %s436 = sand.u32 %s108, 1
        %s437 = smul.addr %s436, 64
        %s438 = scalar_lea.vmem [#allocation9], %s437
        // Predicated region
        $region61: #{tpu_custom_call.1} parent=51 // pred_check
          %p439 = pneg %p121
        $region62: #{tpu_custom_call.1} parent=51 // pred_check_branch
          %441 = sbr.rel (%p439) target = $region64
        $region63: #{tpu_custom_call.1} parent=51 // pred_region
          %442 = dma.done %s435, 1024
        $region64: #{tpu_custom_call.1} parent=51 // pred_fallthru
          _
        // Predicated region
        $region65: #{tpu_custom_call.1} parent=51 // pred_check
          %p443 = pneg %p168
        $region66: #{tpu_custom_call.1} parent=51 // pred_check_branch
          %445 = sbr.rel (%p443) target = $region68
        $region67: #{tpu_custom_call.1} parent=51 // pred_region
          %446 = dma.done [#allocation11], 1024
        $region68: #{tpu_custom_call.1} parent=51 // pred_fallthru
          _
        // Predicated region
        $region69: #{tpu_custom_call.1} parent=51 // pred_check
          %p447 = pneg %p210
        $region70: #{tpu_custom_call.1} parent=51 // pred_check_branch
          %449 = sbr.rel (%p447) target = $region72
        $region71: #{tpu_custom_call.1} parent=51 // pred_region
          %450 = dma.done [#allocation11], 1024
        $region72: #{tpu_custom_call.1} parent=51 // pred_fallthru
          _
        %s451 = sand.u32 %s56, 1
        %s452 = scalar_lea.sflag [#allocation5], %s451
        %s453 = sand.u32 %s56, 1
        %s454 = smul.addr %s453, 64
        %s455 = scalar_lea.vmem [#allocation4], %s454
        %p456 = pneg %p69
        %p457 = pneg %p66
        %s458 = sand.u32 %s34, 1
        %s459 = scalar_lea.sflag [#allocation8], %s458
        %s460 = sand.u32 %s82, 1
        %s461 = smul.addr %s460, 64
        %s462 = scalar_lea.vmem [#allocation7], %s461
        %p463 = pneg %p95
        %p464 = pneg %p92
        %s465 = sand.u32 %s34, 1
        %s466 = scalar_lea.sflag [#allocation8], %s465
        %s467 = sand.u32 %s108, 1
        %s468 = smul.addr %s467, 64
        %s469 = scalar_lea.vmem [#allocation9], %s468
        %p470 = pneg %p121
        %p471 = pneg %p118
        %p472 = scmp.lt.s32.totalorder %s38, 1
        %s473 = scalar_select %p472, %s38, 1
        %s474 = scalar_lea.vmem %s3, %s473
        %p475 = pneg %p147
        %p476 = pneg %p144
        %p477 = pneg %p168
        %p478 = pneg %p165
        %p479 = pneg %p189
        %p480 = pneg %p186
        %p481 = pneg %p210
        %p482 = pneg %p207
        %p483 = pneg %p231
        %p484 = pneg %p228
        %p485 = pneg %p259
        %p486 = pneg %p256
        %s487 = sand.u32 %s246, 1
        %s488 = scalar_lea.sflag [#allocation6], %s487
        %s489 = sand.u32 %s246, 1
        %s490 = smul.addr %s489, 128
        %s491 = scalar_lea.vmem [#allocation13], %s490
        %p492 = pneg %p287
        %p493 = pneg %p284
        %s494 = sand.u32 %s274, 1
        %s495 = scalar_lea.sflag [#allocation15], %s494
        %s496 = sand.u32 %s274, 1
        %s497 = smul.addr %s496, 64
        %s498 = scalar_lea.vmem [#allocation14], %s497
        %s499 = smul.u32 16, %s39
        %p500 = scmp.lt.s32.totalorder %s38, 1
        %s501 = scalar_select %p500, %s38, 1
        %s502 = scalar_lea.vmem %s3, %s501
        %s503 = smul.u32 16, %s39
        %s504 = smul.u32 16, %s39
        %p506 = scmp.eq.s32.totalorder %s39, 0
        // Predicated region
        $region73: #{tpu_custom_call.1} parent=51 // pred_check
          %p507 = pneg %p506
        $region74: #{tpu_custom_call.1} parent=51 // pred_check_branch
          %509 = sbr.rel (%p507) target = $region76
        $region75: #{tpu_custom_call.1} parent=51 // pred_region
          %v510 = vld [vmem:[%s429] sm:$0xf]
          %v511 = vld [vmem:[%s429 + $0x4] sm:$0xf]
          %v512 = vld [vmem:[%s429 + $0x8] sm:$0xf]
          %v513 = vld [vmem:[%s429 + $0xc] sm:$0xf]
          %v514 = vld [vmem:[%s429 + $0x10] sm:$0xf]
          %v515 = vld [vmem:[%s429 + $0x14] sm:$0xf]
          %v516 = vld [vmem:[%s429 + $0x18] sm:$0xf]
          %v517 = vld [vmem:[%s429 + $0x1c] sm:$0xf]
          %v518 = vld [vmem:[%s429 + $0x20] sm:$0xf]
          %v519 = vld [vmem:[%s429 + $0x24] sm:$0xf]
          %v520 = vld [vmem:[%s429 + $0x28] sm:$0xf]
          %v521 = vld [vmem:[%s429 + $0x2c] sm:$0xf]
          %v522 = vld [vmem:[%s429 + $0x30] sm:$0xf]
          %v523 = vld [vmem:[%s429 + $0x34] sm:$0xf]
          %v524 = vld [vmem:[%s429 + $0x38] sm:$0xf]
          %v525 = vld [vmem:[%s429 + $0x3c] sm:$0xf]
          %v526 = vld [vmem:[#allocation10] sm:$0xf]
          %v527 = vld [vmem:[#allocation10 + $0x4] sm:$0xf]
          %v528 = vld [vmem:[#allocation10 + $0x8] sm:$0xf]
          %v529 = vld [vmem:[#allocation10 + $0xc] sm:$0xf]
          %v530 = vld [vmem:[#allocation10 + $0x10] sm:$0xf]
          %v531 = vld [vmem:[#allocation10 + $0x14] sm:$0xf]
          %v532 = vld [vmem:[#allocation10 + $0x18] sm:$0xf]
          %v533 = vld [vmem:[#allocation10 + $0x1c] sm:$0xf]
          %v534 = vld [vmem:[#allocation10 + $0x20] sm:$0xf]
          %v535 = vld [vmem:[#allocation10 + $0x24] sm:$0xf]
          %v536 = vld [vmem:[#allocation10 + $0x28] sm:$0xf]
          %v537 = vld [vmem:[#allocation10 + $0x2c] sm:$0xf]
          %v538 = vld [vmem:[#allocation10 + $0x30] sm:$0xf]
          %v539 = vld [vmem:[#allocation10 + $0x34] sm:$0xf]
          %v540 = vld [vmem:[#allocation10 + $0x38] sm:$0xf]
          %v541 = vld [vmem:[#allocation10 + $0x3c] sm:$0xf]
          %v542 = vld [vmem:[%s5] sm:$0x1]
          %v544 = vlaneseq
          %v545 = vshrl.u32 %v544, 7
          %v546 = vsub.s32 0, %v545
          %v547 = vrot.slane %v542, %v546
          %v565 = vunpack.c.l.b16 %v510
          %v566 = vunpack.c.l.b16 %v511
          %v567 = vunpack.c.l.b16 %v512
          %v568 = vunpack.c.l.b16 %v513
          %v569 = vunpack.c.l.b16 %v514
          %v570 = vunpack.c.l.b16 %v515
          %v571 = vunpack.c.l.b16 %v516
          %v572 = vunpack.c.l.b16 %v517
          %v573 = vunpack.c.l.b16 %v518
          %v574 = vunpack.c.l.b16 %v519
          %v575 = vunpack.c.l.b16 %v520
          %v576 = vunpack.c.l.b16 %v521
          %v577 = vunpack.c.l.b16 %v522
          %v578 = vunpack.c.l.b16 %v523
          %v579 = vunpack.c.l.b16 %v524
          %v580 = vunpack.c.l.b16 %v525
          %v581 = vpack.c.b16 %v566, %v565
          %v582 = vpack.c.b16 %v568, %v567
          %v583 = vpack.c.b16 %v570, %v569
          %v584 = vpack.c.b16 %v572, %v571
          %v585 = vpack.c.b16 %v574, %v573
          %v586 = vpack.c.b16 %v576, %v575
          %v587 = vpack.c.b16 %v578, %v577
          %v588 = vpack.c.b16 %v580, %v579
          %v613 = vunpack.c.l.b16 %v526
          %v614 = vunpack.c.l.b16 %v527
          %v615 = vunpack.c.l.b16 %v528
          %v616 = vunpack.c.l.b16 %v529
          %v617 = vunpack.c.l.b16 %v530
          %v618 = vunpack.c.l.b16 %v531
          %v619 = vunpack.c.l.b16 %v532
          %v620 = vunpack.c.l.b16 %v533
          %v621 = vunpack.c.l.b16 %v534
          %v622 = vunpack.c.l.b16 %v535
          %v623 = vunpack.c.l.b16 %v536
          %v624 = vunpack.c.l.b16 %v537
          %v625 = vunpack.c.l.b16 %v538
          %v626 = vunpack.c.l.b16 %v539
          %v627 = vunpack.c.l.b16 %v540
          %v628 = vunpack.c.l.b16 %v541
          %v629 = vpack.c.b16 %v614, %v613
          %v630 = vpack.c.b16 %v616, %v615
          %v631 = vpack.c.b16 %v618, %v617
          %v632 = vpack.c.b16 %v620, %v619
          %v633 = vpack.c.b16 %v622, %v621
          %v634 = vpack.c.b16 %v624, %v623
          %v635 = vpack.c.b16 %v626, %v625
          %v636 = vpack.c.b16 %v628, %v627
          %645 = vmatprep.subr.bf16.mxu0 0
          %646 = vmatpush1.bf16.msra.mxu0 %v629
          %647 = vmatprep.subr.bf16.mxu0 0
          %648 = vmatpush1.bf16.msra.mxu0 %v630
          %649 = vmatprep.subr.bf16.mxu0 0
          %650 = vmatpush1.bf16.msra.mxu0 %v631
          %651 = vmatprep.subr.bf16.mxu0 0
          %652 = vmatpush1.bf16.msra.mxu0 %v632
          %653 = vmatprep.subr.bf16.mxu0 0
          %654 = vmatpush1.bf16.msra.mxu0 %v633
          %655 = vmatprep.subr.bf16.mxu0 0
          %656 = vmatpush1.bf16.msra.mxu0 %v634
          %657 = vmatprep.subr.bf16.mxu0 0
          %658 = vmatpush1.bf16.msra.mxu0 %v635
          %659 = vmatprep.subr.bf16.mxu0 0
          %660 = vmatpush1.bf16.msra.mxu0 %v636
          %661 = vmatprep.subr.bf16.mxu0 0
          %662 = vmatpush1.bf16.msra.mxu0 0
          %663 = vmatprep.subr.bf16.mxu0 0
          %664 = vmatpush1.bf16.msra.mxu0 0
          %665 = vmatprep.subr.bf16.mxu0 0
          %666 = vmatpush1.bf16.msra.mxu0 0
          %667 = vmatprep.subr.bf16.mxu0 0
          %668 = vmatpush1.bf16.msra.mxu0 0
          %669 = vmatprep.subr.bf16.mxu0 0
          %670 = vmatpush1.bf16.msra.mxu0 0
          %671 = vmatprep.subr.bf16.mxu0 0
          %672 = vmatpush1.bf16.msra.mxu0 0
          %673 = vmatprep.subr.bf16.mxu0 0
          %674 = vmatpush1.bf16.msra.mxu0 0
          %675 = vmatprep.subr.bf16.mxu0 0
          %676 = vmatpush1.bf16.msra.mxu0 0
          %677 = vmatprep.mubr.bf16.mxu0 0
          %678 = vmatmul.mubr.bf16.gmra.mrb[0].mxu0 %v581
          %v679 = vpop.f32.mrb[0].mxu0
          %v680 = vadd.f32 %v547, %v679
          %v681 = vpop.f32.mrb[0].mxu0
          %v682 = vpop.f32.mrb[0].mxu0
          %v683 = vadd.f32 %v547, %v682
          %v684 = vpop.f32.mrb[0].mxu0
          %685 = vmatprep.mubr.bf16.mxu0 0
          %686 = vmatmul.mubr.bf16.gmra.mrb[0].mxu0 %v582
          %v687 = vpop.f32.mrb[0].mxu0
          %v688 = vadd.f32 %v547, %v687
          %v689 = vpop.f32.mrb[0].mxu0
          %v690 = vpop.f32.mrb[0].mxu0
          %v691 = vadd.f32 %v547, %v690
          %v692 = vpop.f32.mrb[0].mxu0
          %693 = vmatprep.mubr.bf16.mxu0 0
          %694 = vmatmul.mubr.bf16.gmra.mrb[0].mxu0 %v583
          %v695 = vpop.f32.mrb[0].mxu0
          %v696 = vadd.f32 %v547, %v695
          %v697 = vpop.f32.mrb[0].mxu0
          %v698 = vpop.f32.mrb[0].mxu0
          %v699 = vadd.f32 %v547, %v698
          %v700 = vpop.f32.mrb[0].mxu0
          %701 = vmatprep.mubr.bf16.mxu0 0
          %702 = vmatmul.mubr.bf16.gmra.mrb[0].mxu0 %v584
          %v703 = vpop.f32.mrb[0].mxu0
          %v704 = vadd.f32 %v547, %v703
          %v705 = vpop.f32.mrb[0].mxu0
          %v706 = vpop.f32.mrb[0].mxu0
          %v707 = vadd.f32 %v547, %v706
          %v708 = vpop.f32.mrb[0].mxu0
          %709 = vmatprep.mubr.bf16.mxu0 0
          %710 = vmatmul.mubr.bf16.gmra.mrb[0].mxu0 %v585
          %v711 = vpop.f32.mrb[0].mxu0
          %v712 = vadd.f32 %v547, %v711
          %v713 = vpop.f32.mrb[0].mxu0
          %v714 = vpop.f32.mrb[0].mxu0
          %v715 = vadd.f32 %v547, %v714
          %v716 = vpop.f32.mrb[0].mxu0
          %717 = vmatprep.mubr.bf16.mxu0 0
          %718 = vmatmul.mubr.bf16.gmra.mrb[0].mxu0 %v586
          %v719 = vpop.f32.mrb[0].mxu0
          %v720 = vadd.f32 %v547, %v719
          %v721 = vpop.f32.mrb[0].mxu0
          %v722 = vpop.f32.mrb[0].mxu0
          %v723 = vadd.f32 %v547, %v722
          %v724 = vpop.f32.mrb[0].mxu0
          %725 = vmatprep.mubr.bf16.mxu0 0
          %726 = vmatmul.mubr.bf16.gmra.mrb[0].mxu0 %v587
          %v727 = vpop.f32.mrb[0].mxu0
          %v728 = vadd.f32 %v547, %v727
          %v729 = vpop.f32.mrb[0].mxu0
          %v730 = vpop.f32.mrb[0].mxu0
          %v731 = vadd.f32 %v547, %v730
          %v732 = vpop.f32.mrb[0].mxu0
          %733 = vmatprep.mubr.bf16.mxu0 0
          %734 = vmatmul.mubr.bf16.gmra.mrb[0].mxu0 %v588
          %v735 = vpop.f32.mrb[0].mxu0
          %v736 = vadd.f32 %v547, %v735
          %v737 = vpop.f32.mrb[0].mxu0
          %v738 = vpop.f32.mrb[0].mxu0
          %v739 = vadd.f32 %v547, %v738
          %v740 = vpop.f32.mrb[0].mxu0
          %741 = vdwg.mxu0
          %v742 = vld [vmem:[%s438] sm:$0xf]
          %v743 = vld [vmem:[%s438 + $0x4] sm:$0xf]
          %v744 = vld [vmem:[%s438 + $0x8] sm:$0xf]
          %v745 = vld [vmem:[%s438 + $0xc] sm:$0xf]
          %v746 = vld [vmem:[%s438 + $0x10] sm:$0xf]
          %v747 = vld [vmem:[%s438 + $0x14] sm:$0xf]
          %v748 = vld [vmem:[%s438 + $0x18] sm:$0xf]
          %v749 = vld [vmem:[%s438 + $0x1c] sm:$0xf]
          %v750 = vld [vmem:[%s438 + $0x20] sm:$0xf]
          %v751 = vld [vmem:[%s438 + $0x24] sm:$0xf]
          %v752 = vld [vmem:[%s438 + $0x28] sm:$0xf]
          %v753 = vld [vmem:[%s438 + $0x2c] sm:$0xf]
          %v754 = vld [vmem:[%s438 + $0x30] sm:$0xf]
          %v755 = vld [vmem:[%s438 + $0x34] sm:$0xf]
          %v756 = vld [vmem:[%s438 + $0x38] sm:$0xf]
          %v757 = vld [vmem:[%s438 + $0x3c] sm:$0xf]
          %v774 = vunpack.c.l.b16 %v742
          %v775 = vunpack.c.l.b16 %v743
          %v776 = vunpack.c.l.b16 %v744
          %v777 = vunpack.c.l.b16 %v745
          %v778 = vunpack.c.l.b16 %v746
          %v779 = vunpack.c.l.b16 %v747
          %v780 = vunpack.c.l.b16 %v748
          %v781 = vunpack.c.l.b16 %v749
          %v782 = vunpack.c.l.b16 %v750
          %v783 = vunpack.c.l.b16 %v751
          %v784 = vunpack.c.l.b16 %v752
          %v785 = vunpack.c.l.b16 %v753
          %v786 = vunpack.c.l.b16 %v754
          %v787 = vunpack.c.l.b16 %v755
          %v788 = vunpack.c.l.b16 %v756
          %v789 = vunpack.c.l.b16 %v757
          %v790 = vpack.c.b16 %v775, %v774
          %v791 = vpack.c.b16 %v777, %v776
          %v792 = vpack.c.b16 %v779, %v778
          %v793 = vpack.c.b16 %v781, %v780
          %v794 = vpack.c.b16 %v783, %v782
          %v795 = vpack.c.b16 %v785, %v784
          %v796 = vpack.c.b16 %v787, %v786
          %v797 = vpack.c.b16 %v789, %v788
          %806 = vmatprep.subr.bf16.mxu0 0
          %807 = vmatpush1.bf16.msra.mxu0 %v629
          %808 = vmatprep.subr.bf16.mxu0 0
          %809 = vmatpush1.bf16.msra.mxu0 %v630
          %810 = vmatprep.subr.bf16.mxu0 0
          %811 = vmatpush1.bf16.msra.mxu0 %v631
          %812 = vmatprep.subr.bf16.mxu0 0
          %813 = vmatpush1.bf16.msra.mxu0 %v632
          %814 = vmatprep.subr.bf16.mxu0 0
          %815 = vmatpush1.bf16.msra.mxu0 %v633
          %816 = vmatprep.subr.bf16.mxu0 0
          %817 = vmatpush1.bf16.msra.mxu0 %v634
          %818 = vmatprep.subr.bf16.mxu0 0
          %819 = vmatpush1.bf16.msra.mxu0 %v635
          %820 = vmatprep.subr.bf16.mxu0 0
          %821 = vmatpush1.bf16.msra.mxu0 %v636
          %822 = vmatprep.subr.bf16.mxu0 0
          %823 = vmatpush1.bf16.msra.mxu0 0
          %824 = vmatprep.subr.bf16.mxu0 0
          %825 = vmatpush1.bf16.msra.mxu0 0
          %826 = vmatprep.subr.bf16.mxu0 0
          %827 = vmatpush1.bf16.msra.mxu0 0
          %828 = vmatprep.subr.bf16.mxu0 0
          %829 = vmatpush1.bf16.msra.mxu0 0
          %830 = vmatprep.subr.bf16.mxu0 0
          %831 = vmatpush1.bf16.msra.mxu0 0
          %832 = vmatprep.subr.bf16.mxu0 0
          %833 = vmatpush1.bf16.msra.mxu0 0
          %834 = vmatprep.subr.bf16.mxu0 0
          %835 = vmatpush1.bf16.msra.mxu0 0
          %836 = vmatprep.subr.bf16.mxu0 0
          %837 = vmatpush1.bf16.msra.mxu0 0
          %838 = vmatprep.mubr.bf16.mxu0 0
          %839 = vmatmul.mubr.bf16.gmra.mrb[0].mxu0 %v790
          %v840 = vpop.f32.mrb[0].mxu0
          %v841 = vadd.f32 %v547, %v840
          %v842 = vpop.f32.mrb[0].mxu0
          %v843 = vpop.f32.mrb[0].mxu0
          %v844 = vadd.f32 %v547, %v843
          %v845 = vpop.f32.mrb[0].mxu0
          %846 = vmatprep.mubr.bf16.mxu0 0
          %847 = vmatmul.mubr.bf16.gmra.mrb[0].mxu0 %v791
          %v848 = vpop.f32.mrb[0].mxu0
          %v849 = vadd.f32 %v547, %v848
          %v850 = vpop.f32.mrb[0].mxu0
          %v851 = vpop.f32.mrb[0].mxu0
          %v852 = vadd.f32 %v547, %v851
          %v853 = vpop.f32.mrb[0].mxu0
          %854 = vmatprep.mubr.bf16.mxu0 0
          %855 = vmatmul.mubr.bf16.gmra.mrb[0].mxu0 %v792
          %v856 = vpop.f32.mrb[0].mxu0
          %v857 = vadd.f32 %v547, %v856
          %v858 = vpop.f32.mrb[0].mxu0
          %v859 = vpop.f32.mrb[0].mxu0
          %v860 = vadd.f32 %v547, %v859
          %v861 = vpop.f32.mrb[0].mxu0
          %862 = vmatprep.mubr.bf16.mxu0 0
          %863 = vmatmul.mubr.bf16.gmra.mrb[0].mxu0 %v793
          %v864 = vpop.f32.mrb[0].mxu0
          %v865 = vadd.f32 %v547, %v864
          %v866 = vpop.f32.mrb[0].mxu0
          %v867 = vpop.f32.mrb[0].mxu0
          %v868 = vadd.f32 %v547, %v867
          %v869 = vpop.f32.mrb[0].mxu0
          %870 = vmatprep.mubr.bf16.mxu0 0
          %871 = vmatmul.mubr.bf16.gmra.mrb[0].mxu0 %v794
          %v872 = vpop.f32.mrb[0].mxu0
          %v873 = vadd.f32 %v547, %v872
          %v874 = vpop.f32.mrb[0].mxu0
          %v875 = vpop.f32.mrb[0].mxu0
          %v876 = vadd.f32 %v547, %v875
          %v877 = vpop.f32.mrb[0].mxu0
          %878 = vmatprep.mubr.bf16.mxu0 0
          %879 = vmatmul.mubr.bf16.gmra.mrb[0].mxu0 %v795
          %v880 = vpop.f32.mrb[0].mxu0
          %v881 = vadd.f32 %v547, %v880
          %v882 = vpop.f32.mrb[0].mxu0
          %v883 = vpop.f32.mrb[0].mxu0
          %v884 = vadd.f32 %v547, %v883
          %v885 = vpop.f32.mrb[0].mxu0
          %886 = vmatprep.mubr.bf16.mxu0 0
          %887 = vmatmul.mubr.bf16.gmra.mrb[0].mxu0 %v796
          %v888 = vpop.f32.mrb[0].mxu0
          %v889 = vadd.f32 %v547, %v888
          %v890 = vpop.f32.mrb[0].mxu0
          %v891 = vpop.f32.mrb[0].mxu0
          %v892 = vadd.f32 %v547, %v891
          %v893 = vpop.f32.mrb[0].mxu0
          %894 = vmatprep.mubr.bf16.mxu0 0
          %895 = vmatmul.mubr.bf16.gmra.mrb[0].mxu0 %v797
          %v896 = vpop.f32.mrb[0].mxu0
          %v897 = vadd.f32 %v547, %v896
          %v898 = vpop.f32.mrb[0].mxu0
          %v899 = vpop.f32.mrb[0].mxu0
          %v900 = vadd.f32 %v547, %v899
          %v901 = vpop.f32.mrb[0].mxu0
          %902 = vdwg.mxu0
          %v903 = vpack.c.bf16 %v683, %v680
          %v904 = vpack.c.bf16 %v691, %v688
          %v905 = vpack.c.bf16 %v699, %v696
          %v906 = vpack.c.bf16 %v707, %v704
          %v907 = vpack.c.bf16 %v715, %v712
          %v908 = vpack.c.bf16 %v723, %v720
          %v909 = vpack.c.bf16 %v731, %v728
          %v910 = vpack.c.bf16 %v739, %v736
          %911 = vst [vmem:[#allocation2] sm:$0xff] %v903
          %912 = vst [vmem:[#allocation2 + $0x8] sm:$0xff] %v904
          %913 = vst [vmem:[#allocation2 + $0x10] sm:$0xff] %v905
          %914 = vst [vmem:[#allocation2 + $0x18] sm:$0xff] %v906
          %915 = vst [vmem:[#allocation2 + $0x20] sm:$0xff] %v907
          %916 = vst [vmem:[#allocation2 + $0x28] sm:$0xff] %v908
          %917 = vst [vmem:[#allocation2 + $0x30] sm:$0xff] %v909
          %918 = vst [vmem:[#allocation2 + $0x38] sm:$0xff] %v910
          %v919 = vpack.c.bf16 %v844, %v841
          %v920 = vpack.c.bf16 %v852, %v849
          %v921 = vpack.c.bf16 %v860, %v857
          %v922 = vpack.c.bf16 %v868, %v865
          %v923 = vpack.c.bf16 %v876, %v873
          %v924 = vpack.c.bf16 %v884, %v881
          %v925 = vpack.c.bf16 %v892, %v889
          %v926 = vpack.c.bf16 %v900, %v897
          %927 = vst [vmem:[#allocation3] sm:$0xff] %v919
          %928 = vst [vmem:[#allocation3 + $0x8] sm:$0xff] %v920
          %929 = vst [vmem:[#allocation3 + $0x10] sm:$0xff] %v921
          %930 = vst [vmem:[#allocation3 + $0x18] sm:$0xff] %v922
          %931 = vst [vmem:[#allocation3 + $0x20] sm:$0xff] %v923
          %932 = vst [vmem:[#allocation3 + $0x28] sm:$0xff] %v924
          %933 = vst [vmem:[#allocation3 + $0x30] sm:$0xff] %v925
          %934 = vst [vmem:[#allocation3 + $0x38] sm:$0xff] %v926
        $region76: #{tpu_custom_call.1} parent=51 // pred_fallthru
          _
        %v935 = vld [vmem:[%s420] sm:$0xf]
        %v936 = vld [vmem:[%s420 + $0x4] sm:$0xf]
        %v937 = vld [vmem:[%s420 + $0x8] sm:$0xf]
        %v938 = vld [vmem:[%s420 + $0xc] sm:$0xf]
        %v939 = vld [vmem:[%s420 + $0x10] sm:$0xf]
        %v940 = vld [vmem:[%s420 + $0x14] sm:$0xf]
        %v941 = vld [vmem:[%s420 + $0x18] sm:$0xf]
        %v942 = vld [vmem:[%s420 + $0x1c] sm:$0xf]
        %v943 = vld [vmem:[%s420 + $0x20] sm:$0xf]
        %v944 = vld [vmem:[%s420 + $0x24] sm:$0xf]
        %v945 = vld [vmem:[%s420 + $0x28] sm:$0xf]
        %v946 = vld [vmem:[%s420 + $0x2c] sm:$0xf]
        %v947 = vld [vmem:[%s420 + $0x30] sm:$0xf]
        %v948 = vld [vmem:[%s420 + $0x34] sm:$0xf]
        %v949 = vld [vmem:[%s420 + $0x38] sm:$0xf]
        %v950 = vld [vmem:[%s420 + $0x3c] sm:$0xf]
        %v951 = vld [vmem:[#allocation10] sm:$0xf]
        %v952 = vld [vmem:[#allocation10 + $0x4] sm:$0xf]
        %v953 = vld [vmem:[#allocation10 + $0x8] sm:$0xf]
        %v954 = vld [vmem:[#allocation10 + $0xc] sm:$0xf]
        %v955 = vld [vmem:[#allocation10 + $0x10] sm:$0xf]
        %v956 = vld [vmem:[#allocation10 + $0x14] sm:$0xf]
        %v957 = vld [vmem:[#allocation10 + $0x18] sm:$0xf]
        %v958 = vld [vmem:[#allocation10 + $0x1c] sm:$0xf]
        %v959 = vld [vmem:[#allocation10 + $0x20] sm:$0xf]
        %v960 = vld [vmem:[#allocation10 + $0x24] sm:$0xf]
        %v961 = vld [vmem:[#allocation10 + $0x28] sm:$0xf]
        %v962 = vld [vmem:[#allocation10 + $0x2c] sm:$0xf]
        %v963 = vld [vmem:[#allocation10 + $0x30] sm:$0xf]
        %v964 = vld [vmem:[#allocation10 + $0x34] sm:$0xf]
        %v965 = vld [vmem:[#allocation10 + $0x38] sm:$0xf]
        %v966 = vld [vmem:[#allocation10 + $0x3c] sm:$0xf]
        %v967 = vld [vmem:[%s5] sm:$0x1]
        %v969 = vlaneseq
        %v970 = vshrl.u32 %v969, 7
        %v971 = vsub.s32 0, %v970
        %v972 = vrot.slane %v967, %v971
        %v990 = vunpack.c.l.b16 %v935
        %v991 = vunpack.c.l.b16 %v936
        %v992 = vunpack.c.l.b16 %v937
        %v993 = vunpack.c.l.b16 %v938
        %v994 = vunpack.c.l.b16 %v939
        %v995 = vunpack.c.l.b16 %v940
        %v996 = vunpack.c.l.b16 %v941
        %v997 = vunpack.c.l.b16 %v942
        %v998 = vunpack.c.l.b16 %v943
        %v999 = vunpack.c.l.b16 %v944
        %v1000 = vunpack.c.l.b16 %v945
        %v1001 = vunpack.c.l.b16 %v946
        %v1002 = vunpack.c.l.b16 %v947
        %v1003 = vunpack.c.l.b16 %v948
        %v1004 = vunpack.c.l.b16 %v949
        %v1005 = vunpack.c.l.b16 %v950
        %v1006 = vpack.c.b16 %v991, %v990
        %v1007 = vpack.c.b16 %v993, %v992
        %v1008 = vpack.c.b16 %v995, %v994
        %v1009 = vpack.c.b16 %v997, %v996
        %v1010 = vpack.c.b16 %v999, %v998
        %v1011 = vpack.c.b16 %v1001, %v1000
        %v1012 = vpack.c.b16 %v1003, %v1002
        %v1013 = vpack.c.b16 %v1005, %v1004
        %v1038 = vunpack.c.l.b16 %v951
        %v1039 = vunpack.c.l.b16 %v952
        %v1040 = vunpack.c.l.b16 %v953
        %v1041 = vunpack.c.l.b16 %v954
        %v1042 = vunpack.c.l.b16 %v955
        %v1043 = vunpack.c.l.b16 %v956
        %v1044 = vunpack.c.l.b16 %v957
        %v1045 = vunpack.c.l.b16 %v958
        %v1046 = vunpack.c.l.b16 %v959
        %v1047 = vunpack.c.l.b16 %v960
        %v1048 = vunpack.c.l.b16 %v961
        %v1049 = vunpack.c.l.b16 %v962
        %v1050 = vunpack.c.l.b16 %v963
        %v1051 = vunpack.c.l.b16 %v964
        %v1052 = vunpack.c.l.b16 %v965
        %v1053 = vunpack.c.l.b16 %v966
        %v1054 = vpack.c.b16 %v1039, %v1038
        %v1055 = vpack.c.b16 %v1041, %v1040
        %v1056 = vpack.c.b16 %v1043, %v1042
        %v1057 = vpack.c.b16 %v1045, %v1044
        %v1058 = vpack.c.b16 %v1047, %v1046
        %v1059 = vpack.c.b16 %v1049, %v1048
        %v1060 = vpack.c.b16 %v1051, %v1050
        %v1061 = vpack.c.b16 %v1053, %v1052
        %1070 = vmatprep.subr.bf16.mxu0 0
        %1071 = vmatpush1.bf16.msra.mxu0 %v1054
        %1072 = vmatprep.subr.bf16.mxu0 0
        %1073 = vmatpush1.bf16.msra.mxu0 %v1055
        %1074 = vmatprep.subr.bf16.mxu0 0
        %1075 = vmatpush1.bf16.msra.mxu0 %v1056
        %1076 = vmatprep.subr.bf16.mxu0 0
        %1077 = vmatpush1.bf16.msra.mxu0 %v1057
        %1078 = vmatprep.subr.bf16.mxu0 0
        %1079 = vmatpush1.bf16.msra.mxu0 %v1058
        %1080 = vmatprep.subr.bf16.mxu0 0
        %1081 = vmatpush1.bf16.msra.mxu0 %v1059
        %1082 = vmatprep.subr.bf16.mxu0 0
        %1083 = vmatpush1.bf16.msra.mxu0 %v1060
        %1084 = vmatprep.subr.bf16.mxu0 0
        %1085 = vmatpush1.bf16.msra.mxu0 %v1061
        %1086 = vmatprep.subr.bf16.mxu0 0
        %1087 = vmatpush1.bf16.msra.mxu0 0
        %1088 = vmatprep.subr.bf16.mxu0 0
        %1089 = vmatpush1.bf16.msra.mxu0 0
        %1090 = vmatprep.subr.bf16.mxu0 0
        %1091 = vmatpush1.bf16.msra.mxu0 0
        %1092 = vmatprep.subr.bf16.mxu0 0
        %1093 = vmatpush1.bf16.msra.mxu0 0
        %1094 = vmatprep.subr.bf16.mxu0 0
        %1095 = vmatpush1.bf16.msra.mxu0 0
        %1096 = vmatprep.subr.bf16.mxu0 0
        %1097 = vmatpush1.bf16.msra.mxu0 0
        %1098 = vmatprep.subr.bf16.mxu0 0
        %1099 = vmatpush1.bf16.msra.mxu0 0
        %1100 = vmatprep.subr.bf16.mxu0 0
        %1101 = vmatpush1.bf16.msra.mxu0 0
        %1102 = vmatprep.mubr.bf16.mxu0 0
        %1103 = vmatmul.mubr.bf16.gmra.mrb[0].mxu0 %v1006
        %v1104 = vpop.f32.mrb[0].mxu0
        %v1105 = vadd.f32 %v972, %v1104
        %v1106 = vpop.f32.mrb[0].mxu0
        %v1107 = vpop.f32.mrb[0].mxu0
        %v1108 = vadd.f32 %v972, %v1107
        %v1109 = vpop.f32.mrb[0].mxu0
        %1110 = vmatprep.mubr.bf16.mxu0 0
        %1111 = vmatmul.mubr.bf16.gmra.mrb[0].mxu0 %v1007
        %v1112 = vpop.f32.mrb[0].mxu0
        %v1113 = vadd.f32 %v972, %v1112
        %v1114 = vpop.f32.mrb[0].mxu0
        %v1115 = vpop.f32.mrb[0].mxu0
        %v1116 = vadd.f32 %v972, %v1115
        %v1117 = vpop.f32.mrb[0].mxu0
        %1118 = vmatprep.mubr.bf16.mxu0 0
        %1119 = vmatmul.mubr.bf16.gmra.mrb[0].mxu0 %v1008
        %v1120 = vpop.f32.mrb[0].mxu0
        %v1121 = vadd.f32 %v972, %v1120
        %v1122 = vpop.f32.mrb[0].mxu0
        %v1123 = vpop.f32.mrb[0].mxu0
        %v1124 = vadd.f32 %v972, %v1123
        %v1125 = vpop.f32.mrb[0].mxu0
        %1126 = vmatprep.mubr.bf16.mxu0 0
        %1127 = vmatmul.mubr.bf16.gmra.mrb[0].mxu0 %v1009
        %v1128 = vpop.f32.mrb[0].mxu0
        %v1129 = vadd.f32 %v972, %v1128
        %v1130 = vpop.f32.mrb[0].mxu0
        %v1131 = vpop.f32.mrb[0].mxu0
        %v1132 = vadd.f32 %v972, %v1131
        %v1133 = vpop.f32.mrb[0].mxu0
        %1134 = vmatprep.mubr.bf16.mxu0 0
        %1135 = vmatmul.mubr.bf16.gmra.mrb[0].mxu0 %v1010
        %v1136 = vpop.f32.mrb[0].mxu0
        %v1137 = vadd.f32 %v972, %v1136
        %v1138 = vpop.f32.mrb[0].mxu0
        %v1139 = vpop.f32.mrb[0].mxu0
        %v1140 = vadd.f32 %v972, %v1139
        %v1141 = vpop.f32.mrb[0].mxu0
        %1142 = vmatprep.mubr.bf16.mxu0 0
        %1143 = vmatmul.mubr.bf16.gmra.mrb[0].mxu0 %v1011
        %v1144 = vpop.f32.mrb[0].mxu0
        %v1145 = vadd.f32 %v972, %v1144
        %v1146 = vpop.f32.mrb[0].mxu0
        %v1147 = vpop.f32.mrb[0].mxu0
        %v1148 = vadd.f32 %v972, %v1147
        %v1149 = vpop.f32.mrb[0].mxu0
        %1150 = vmatprep.mubr.bf16.mxu0 0
        %1151 = vmatmul.mubr.bf16.gmra.mrb[0].mxu0 %v1012
        %v1152 = vpop.f32.mrb[0].mxu0
        %v1153 = vadd.f32 %v972, %v1152
        %v1154 = vpop.f32.mrb[0].mxu0
        %v1155 = vpop.f32.mrb[0].mxu0
        %v1156 = vadd.f32 %v972, %v1155
        %v1157 = vpop.f32.mrb[0].mxu0
        %1158 = vmatprep.mubr.bf16.mxu0 0
        %1159 = vmatmul.mubr.bf16.gmra.mrb[0].mxu0 %v1013
        %v1160 = vpop.f32.mrb[0].mxu0
        %v1161 = vadd.f32 %v972, %v1160
        %v1162 = vpop.f32.mrb[0].mxu0
        %v1163 = vpop.f32.mrb[0].mxu0
        %v1164 = vadd.f32 %v972, %v1163
        %v1165 = vpop.f32.mrb[0].mxu0
        %1166 = vdwg.mxu0
        %v1167 = vmul.f32 %v1105, 0.17677669
        %v1168 = vmul.f32 %v1108, 0.17677669
        %v1169 = vmul.f32 %v1113, 0.17677669
        %v1170 = vmul.f32 %v1116, 0.17677669
        %v1171 = vmul.f32 %v1121, 0.17677669
        %v1172 = vmul.f32 %v1124, 0.17677669
        %v1173 = vmul.f32 %v1129, 0.17677669
        %v1174 = vmul.f32 %v1132, 0.17677669
        %v1175 = vmul.f32 %v1137, 0.17677669
        %v1176 = vmul.f32 %v1140, 0.17677669
        %v1177 = vmul.f32 %v1145, 0.17677669
        %v1178 = vmul.f32 %v1148, 0.17677669
        %v1179 = vmul.f32 %v1153, 0.17677669
        %v1180 = vmul.f32 %v1156, 0.17677669
        %v1181 = vmul.f32 %v1161, 0.17677669
        %v1182 = vmul.f32 %v1164, 0.17677669
        %v1183 = vpack.c.bf16 %v1168, %v1167
        %v1184 = vpack.c.bf16 %v1170, %v1169
        %v1185 = vpack.c.bf16 %v1172, %v1171
        %v1186 = vpack.c.bf16 %v1174, %v1173
        %v1187 = vpack.c.bf16 %v1176, %v1175
        %v1188 = vpack.c.bf16 %v1178, %v1177
        %v1189 = vpack.c.bf16 %v1180, %v1179
        %v1190 = vpack.c.bf16 %v1182, %v1181
        %v1191 = vld [vmem:[#allocation2] sm:$0xff]
        %v1192 = vld [vmem:[#allocation2 + $0x8] sm:$0xff]
        %v1193 = vld [vmem:[#allocation2 + $0x10] sm:$0xff]
        %v1194 = vld [vmem:[#allocation2 + $0x18] sm:$0xff]
        %v1195 = vld [vmem:[#allocation2 + $0x20] sm:$0xff]
        %v1196 = vld [vmem:[#allocation2 + $0x28] sm:$0xff]
        %v1197 = vld [vmem:[#allocation2 + $0x30] sm:$0xff]
        %v1198 = vld [vmem:[#allocation2 + $0x38] sm:$0xff]
        %v1199 = vld [vmem:[%s502] sm:$0x1]
        %v1201 = vlaneseq
        %v1202 = vshrl.u32 %v1201, 7
        %v1203 = vsub.s32 0, %v1202
        %v1204 = vrot.slane %v1199, %v1203
        %1206 = vmatprep.subr.bf16.mxu0 0
        %1207 = vmatpush1.bf16.xpose.msra.mxu0 %v1191
        %1208 = vmatprep.subr.bf16.mxu0 0
        %1209 = vmatpush1.bf16.xpose.msra.mxu0 %v1192
        %1210 = vmatprep.subr.bf16.mxu0 0
        %1211 = vmatpush1.bf16.xpose.msra.mxu0 %v1193
        %1212 = vmatprep.subr.bf16.mxu0 0
        %1213 = vmatpush1.bf16.xpose.msra.mxu0 %v1194
        %1214 = vmatprep.subr.bf16.mxu0 0
        %1215 = vmatpush1.bf16.xpose.msra.mxu0 %v1195
        %1216 = vmatprep.subr.bf16.mxu0 0
        %1217 = vmatpush1.bf16.xpose.msra.mxu0 %v1196
        %1218 = vmatprep.subr.bf16.mxu0 0
        %1219 = vmatpush1.bf16.xpose.msra.mxu0 %v1197
        %1220 = vmatprep.subr.bf16.mxu0 0
        %1221 = vmatpush1.bf16.xpose.msra.mxu0 %v1198
        %1222 = vmatprep.subr.bf16.mxu0 0
        %1223 = vmatpush1.bf16.xpose.msra.mxu0 0
        %1224 = vmatprep.subr.bf16.mxu0 0
        %1225 = vmatpush1.bf16.xpose.msra.mxu0 0
        %1226 = vmatprep.subr.bf16.mxu0 0
        %1227 = vmatpush1.bf16.xpose.msra.mxu0 0
        %1228 = vmatprep.subr.bf16.mxu0 0
        %1229 = vmatpush1.bf16.xpose.msra.mxu0 0
        %1230 = vmatprep.subr.bf16.mxu0 0
        %1231 = vmatpush1.bf16.xpose.msra.mxu0 0
        %1232 = vmatprep.subr.bf16.mxu0 0
        %1233 = vmatpush1.bf16.xpose.msra.mxu0 0
        %1234 = vmatprep.subr.bf16.mxu0 0
        %1235 = vmatpush1.bf16.xpose.msra.mxu0 0
        %1236 = vmatprep.subr.bf16.mxu0 0
        %1237 = vmatpush1.bf16.xpose.msra.mxu0 0
        %1238 = vmatprep.mubr.bf16.mxu0 0
        %1239 = vmatmul.mubr.bf16.gmra.mrb[0].mxu0 %v1183
        %v1240 = vpop.f32.mrb[0].mxu0
        %v1241 = vadd.f32 %v1204, %v1240
        %v1242 = vpop.f32.mrb[0].mxu0
        %v1243 = vpop.f32.mrb[0].mxu0
        %v1244 = vadd.f32 %v1204, %v1243
        %v1245 = vpop.f32.mrb[0].mxu0
        %1246 = vmatprep.mubr.bf16.mxu0 0
        %1247 = vmatmul.mubr.bf16.gmra.mrb[0].mxu0 %v1184
        %v1248 = vpop.f32.mrb[0].mxu0
        %v1249 = vadd.f32 %v1204, %v1248
        %v1250 = vpop.f32.mrb[0].mxu0
        %v1251 = vpop.f32.mrb[0].mxu0
        %v1252 = vadd.f32 %v1204, %v1251
        %v1253 = vpop.f32.mrb[0].mxu0
        %1254 = vmatprep.mubr.bf16.mxu0 0
        %1255 = vmatmul.mubr.bf16.gmra.mrb[0].mxu0 %v1185
        %v1256 = vpop.f32.mrb[0].mxu0
        %v1257 = vadd.f32 %v1204, %v1256
        %v1258 = vpop.f32.mrb[0].mxu0
        %v1259 = vpop.f32.mrb[0].mxu0
        %v1260 = vadd.f32 %v1204, %v1259
        %v1261 = vpop.f32.mrb[0].mxu0
        %1262 = vmatprep.mubr.bf16.mxu0 0
        %1263 = vmatmul.mubr.bf16.gmra.mrb[0].mxu0 %v1186
        %v1264 = vpop.f32.mrb[0].mxu0
        %v1265 = vadd.f32 %v1204, %v1264
        %v1266 = vpop.f32.mrb[0].mxu0
        %v1267 = vpop.f32.mrb[0].mxu0
        %v1268 = vadd.f32 %v1204, %v1267
        %v1269 = vpop.f32.mrb[0].mxu0
        %1270 = vmatprep.mubr.bf16.mxu0 0
        %1271 = vmatmul.mubr.bf16.gmra.mrb[0].mxu0 %v1187
        %v1272 = vpop.f32.mrb[0].mxu0
        %v1273 = vadd.f32 %v1204, %v1272
        %v1274 = vpop.f32.mrb[0].mxu0
        %v1275 = vpop.f32.mrb[0].mxu0
        %v1276 = vadd.f32 %v1204, %v1275
        %v1277 = vpop.f32.mrb[0].mxu0
        %1278 = vmatprep.mubr.bf16.mxu0 0
        %1279 = vmatmul.mubr.bf16.gmra.mrb[0].mxu0 %v1188
        %v1280 = vpop.f32.mrb[0].mxu0
        %v1281 = vadd.f32 %v1204, %v1280
        %v1282 = vpop.f32.mrb[0].mxu0
        %v1283 = vpop.f32.mrb[0].mxu0
        %v1284 = vadd.f32 %v1204, %v1283
        %v1285 = vpop.f32.mrb[0].mxu0
        %1286 = vmatprep.mubr.bf16.mxu0 0
        %1287 = vmatmul.mubr.bf16.gmra.mrb[0].mxu0 %v1189
        %v1288 = vpop.f32.mrb[0].mxu0
        %v1289 = vadd.f32 %v1204, %v1288
        %v1290 = vpop.f32.mrb[0].mxu0
        %v1291 = vpop.f32.mrb[0].mxu0
        %v1292 = vadd.f32 %v1204, %v1291
        %v1293 = vpop.f32.mrb[0].mxu0
        %1294 = vmatprep.mubr.bf16.mxu0 0
        %1295 = vmatmul.mubr.bf16.gmra.mrb[0].mxu0 %v1190
        %v1296 = vpop.f32.mrb[0].mxu0
        %v1297 = vadd.f32 %v1204, %v1296
        %v1298 = vpop.f32.mrb[0].mxu0
        %v1299 = vpop.f32.mrb[0].mxu0
        %v1300 = vadd.f32 %v1204, %v1299
        %v1301 = vpop.f32.mrb[0].mxu0
        %1302 = vdwg.mxu0
        %1303 = vmax.xlane.f32.xlu0 %v1241
        %v1304 = vpop.xlane.xlu0 %1303
        %1305 = vmax.xlane.f32.xlu0 %v1244
        %v1306 = vpop.xlane.xlu0 %1305
        %1307 = vmax.xlane.f32.xlu0 %v1249
        %v1308 = vpop.xlane.xlu0 %1307
        %1309 = vmax.xlane.f32.xlu0 %v1252
        %v1310 = vpop.xlane.xlu0 %1309
        %1311 = vmax.xlane.f32.xlu0 %v1257
        %v1312 = vpop.xlane.xlu0 %1311
        %1313 = vmax.xlane.f32.xlu0 %v1260
        %v1314 = vpop.xlane.xlu0 %1313
        %1315 = vmax.xlane.f32.xlu0 %v1265
        %v1316 = vpop.xlane.xlu0 %1315
        %1317 = vmax.xlane.f32.xlu0 %v1268
        %v1318 = vpop.xlane.xlu0 %1317
        %1319 = vmax.xlane.f32.xlu0 %v1273
        %v1320 = vpop.xlane.xlu0 %1319
        %1321 = vmax.xlane.f32.xlu0 %v1276
        %v1322 = vpop.xlane.xlu0 %1321
        %1323 = vmax.xlane.f32.xlu0 %v1281
        %v1324 = vpop.xlane.xlu0 %1323
        %1325 = vmax.xlane.f32.xlu0 %v1284
        %v1326 = vpop.xlane.xlu0 %1325
        %1327 = vmax.xlane.f32.xlu0 %v1289
        %v1328 = vpop.xlane.xlu0 %1327
        %1329 = vmax.xlane.f32.xlu0 %v1292
        %v1330 = vpop.xlane.xlu0 %1329
        %1331 = vmax.xlane.f32.xlu0 %v1297
        %v1332 = vpop.xlane.xlu0 %1331
        %1333 = vmax.xlane.f32.xlu0 %v1300
        %v1334 = vpop.xlane.xlu0 %1333
        %v1335 = vsub.f32 %v1241, %v1304
        %v1336 = vsub.f32 %v1244, %v1306
        %v1337 = vsub.f32 %v1249, %v1308
        %v1338 = vsub.f32 %v1252, %v1310
        %v1339 = vsub.f32 %v1257, %v1312
        %v1340 = vsub.f32 %v1260, %v1314
        %v1341 = vsub.f32 %v1265, %v1316
        %v1342 = vsub.f32 %v1268, %v1318
        %v1343 = vsub.f32 %v1273, %v1320
        %v1344 = vsub.f32 %v1276, %v1322
        %v1345 = vsub.f32 %v1281, %v1324
        %v1346 = vsub.f32 %v1284, %v1326
        %v1347 = vsub.f32 %v1289, %v1328
        %v1348 = vsub.f32 %v1292, %v1330
        %v1349 = vsub.f32 %v1297, %v1332
        %v1350 = vsub.f32 %v1300, %v1334
        %v1351 = vmul.f32 %v1335, 1.442695
        %v1352 = vpow.pop %v1351
        %v1353 = vmul.f32 %v1336, 1.442695
        %v1354 = vpow.pop %v1353
        %v1355 = vmul.f32 %v1337, 1.442695
        %v1356 = vpow.pop %v1355
        %v1357 = vmul.f32 %v1338, 1.442695
        %v1358 = vpow.pop %v1357
        %v1359 = vmul.f32 %v1339, 1.442695
        %v1360 = vpow.pop %v1359
        %v1361 = vmul.f32 %v1340, 1.442695
        %v1362 = vpow.pop %v1361
        %v1363 = vmul.f32 %v1341, 1.442695
        %v1364 = vpow.pop %v1363
        %v1365 = vmul.f32 %v1342, 1.442695
        %v1366 = vpow.pop %v1365
        %v1367 = vmul.f32 %v1343, 1.442695
        %v1368 = vpow.pop %v1367
        %v1369 = vmul.f32 %v1344, 1.442695
        %v1370 = vpow.pop %v1369
        %v1371 = vmul.f32 %v1345, 1.442695
        %v1372 = vpow.pop %v1371
        %v1373 = vmul.f32 %v1346, 1.442695
        %v1374 = vpow.pop %v1373
        %v1375 = vmul.f32 %v1347, 1.442695
        %v1376 = vpow.pop %v1375
        %v1377 = vmul.f32 %v1348, 1.442695
        %v1378 = vpow.pop %v1377
        %v1379 = vmul.f32 %v1349, 1.442695
        %v1380 = vpow.pop %v1379
        %v1381 = vmul.f32 %v1350, 1.442695
        %v1382 = vpow.pop %v1381
        %1383 = vadd.xlane.f32.xlu0 %v1352
        %v1384 = vpop.xlane.xlu0 %1383
        %1385 = vadd.xlane.f32.xlu0 %v1354
        %v1386 = vpop.xlane.xlu0 %1385
        %1387 = vadd.xlane.f32.xlu0 %v1356
        %v1388 = vpop.xlane.xlu0 %1387
        %1389 = vadd.xlane.f32.xlu0 %v1358
        %v1390 = vpop.xlane.xlu0 %1389
        %1391 = vadd.xlane.f32.xlu0 %v1360
        %v1392 = vpop.xlane.xlu0 %1391
        %1393 = vadd.xlane.f32.xlu0 %v1362
        %v1394 = vpop.xlane.xlu0 %1393
        %1395 = vadd.xlane.f32.xlu0 %v1364
        %v1396 = vpop.xlane.xlu0 %1395
        %1397 = vadd.xlane.f32.xlu0 %v1366
        %v1398 = vpop.xlane.xlu0 %1397
        %1399 = vadd.xlane.f32.xlu0 %v1368
        %v1400 = vpop.xlane.xlu0 %1399
        %1401 = vadd.xlane.f32.xlu0 %v1370
        %v1402 = vpop.xlane.xlu0 %1401
        %1403 = vadd.xlane.f32.xlu0 %v1372
        %v1404 = vpop.xlane.xlu0 %1403
        %1405 = vadd.xlane.f32.xlu0 %v1374
        %v1406 = vpop.xlane.xlu0 %1405
        %1407 = vadd.xlane.f32.xlu0 %v1376
        %v1408 = vpop.xlane.xlu0 %1407
        %1409 = vadd.xlane.f32.xlu0 %v1378
        %v1410 = vpop.xlane.xlu0 %1409
        %1411 = vadd.xlane.f32.xlu0 %v1380
        %v1412 = vpop.xlane.xlu0 %1411
        %1413 = vadd.xlane.f32.xlu0 %v1382
        %v1414 = vpop.xlane.xlu0 %1413
        %v1415 = vrcp.pop %v1384
        %v1416 = vrcp.pop %v1386
        %v1417 = vrcp.pop %v1388
        %v1418 = vrcp.pop %v1390
        %v1419 = vrcp.pop %v1392
        %v1420 = vrcp.pop %v1394
        %v1421 = vrcp.pop %v1396
        %v1422 = vrcp.pop %v1398
        %v1423 = vrcp.pop %v1400
        %v1424 = vrcp.pop %v1402
        %v1425 = vrcp.pop %v1404
        %v1426 = vrcp.pop %v1406
        %v1427 = vrcp.pop %v1408
        %v1428 = vrcp.pop %v1410
        %v1429 = vrcp.pop %v1412
        %v1430 = vrcp.pop %v1414
        %v1431 = vmul.f32 %v1352, %v1415
        %v1432 = vmul.f32 %v1354, %v1416
        %v1433 = vmul.f32 %v1356, %v1417
        %v1434 = vmul.f32 %v1358, %v1418
        %v1435 = vmul.f32 %v1360, %v1419
        %v1436 = vmul.f32 %v1362, %v1420
        %v1437 = vmul.f32 %v1364, %v1421
        %v1438 = vmul.f32 %v1366, %v1422
        %v1439 = vmul.f32 %v1368, %v1423
        %v1440 = vmul.f32 %v1370, %v1424
        %v1441 = vmul.f32 %v1372, %v1425
        %v1442 = vmul.f32 %v1374, %v1426
        %v1443 = vmul.f32 %v1376, %v1427
        %v1444 = vmul.f32 %v1378, %v1428
        %v1445 = vmul.f32 %v1380, %v1429
        %v1446 = vmul.f32 %v1382, %v1430
        %v1447 = vpack.c.bf16 %v1432, %v1431
        %v1448 = vpack.c.bf16 %v1434, %v1433
        %v1449 = vpack.c.bf16 %v1436, %v1435
        %v1450 = vpack.c.bf16 %v1438, %v1437
        %v1451 = vpack.c.bf16 %v1440, %v1439
        %v1452 = vpack.c.bf16 %v1442, %v1441
        %v1453 = vpack.c.bf16 %v1444, %v1443
        %v1454 = vpack.c.bf16 %v1446, %v1445
        %v1463 = vunpack.c.l.b16 %v1447
        %v1464 = vunpack.c.h.b16 %v1447
        %v1465 = vunpack.c.l.b16 %v1448
        %v1466 = vunpack.c.h.b16 %v1448
        %v1467 = vunpack.c.l.b16 %v1449
        %v1468 = vunpack.c.h.b16 %v1449
        %v1469 = vunpack.c.l.b16 %v1450
        %v1470 = vunpack.c.h.b16 %v1450
        %v1471 = vunpack.c.l.b16 %v1451
        %v1472 = vunpack.c.h.b16 %v1451
        %v1473 = vunpack.c.l.b16 %v1452
        %v1474 = vunpack.c.h.b16 %v1452
        %v1475 = vunpack.c.l.b16 %v1453
        %v1476 = vunpack.c.h.b16 %v1453
        %v1477 = vunpack.c.l.b16 %v1454
        %v1478 = vunpack.c.h.b16 %v1454
        %v1479 = vpack.c.b16 %v1463, %v1463
        %v1480 = vpack.c.b16 %v1464, %v1464
        %v1481 = vpack.c.b16 %v1465, %v1465
        %v1482 = vpack.c.b16 %v1466, %v1466
        %v1483 = vpack.c.b16 %v1467, %v1467
        %v1484 = vpack.c.b16 %v1468, %v1468
        %v1485 = vpack.c.b16 %v1469, %v1469
        %v1486 = vpack.c.b16 %v1470, %v1470
        %v1487 = vpack.c.b16 %v1471, %v1471
        %v1488 = vpack.c.b16 %v1472, %v1472
        %v1489 = vpack.c.b16 %v1473, %v1473
        %v1490 = vpack.c.b16 %v1474, %v1474
        %v1491 = vpack.c.b16 %v1475, %v1475
        %v1492 = vpack.c.b16 %v1476, %v1476
        %v1493 = vpack.c.b16 %v1477, %v1477
        %v1494 = vpack.c.b16 %v1478, %v1478
        %1511 = vst [vmem:[%s498] sm:$0xf] %v1479
        %1512 = vst [vmem:[%s498 + $0x4] sm:$0xf] %v1480
        %1513 = vst [vmem:[%s498 + $0x8] sm:$0xf] %v1481
        %1514 = vst [vmem:[%s498 + $0xc] sm:$0xf] %v1482
        %1515 = vst [vmem:[%s498 + $0x10] sm:$0xf] %v1483
        %1516 = vst [vmem:[%s498 + $0x14] sm:$0xf] %v1484
        %1517 = vst [vmem:[%s498 + $0x18] sm:$0xf] %v1485
        %1518 = vst [vmem:[%s498 + $0x1c] sm:$0xf] %v1486
        %1519 = vst [vmem:[%s498 + $0x20] sm:$0xf] %v1487
        %1520 = vst [vmem:[%s498 + $0x24] sm:$0xf] %v1488
        %1521 = vst [vmem:[%s498 + $0x28] sm:$0xf] %v1489
        %1522 = vst [vmem:[%s498 + $0x2c] sm:$0xf] %v1490
        %1523 = vst [vmem:[%s498 + $0x30] sm:$0xf] %v1491
        %1524 = vst [vmem:[%s498 + $0x34] sm:$0xf] %v1492
        %1525 = vst [vmem:[%s498 + $0x38] sm:$0xf] %v1493
        %1526 = vst [vmem:[%s498 + $0x3c] sm:$0xf] %v1494
        %v1527 = vld [vmem:[#allocation3] sm:$0xff]
        %v1528 = vld [vmem:[#allocation3 + $0x8] sm:$0xff]
        %v1529 = vld [vmem:[#allocation3 + $0x10] sm:$0xff]
        %v1530 = vld [vmem:[#allocation3 + $0x18] sm:$0xff]
        %v1531 = vld [vmem:[#allocation3 + $0x20] sm:$0xff]
        %v1532 = vld [vmem:[#allocation3 + $0x28] sm:$0xff]
        %v1533 = vld [vmem:[#allocation3 + $0x30] sm:$0xff]
        %v1534 = vld [vmem:[#allocation3 + $0x38] sm:$0xff]
        %1535 = vmatprep.subr.bf16.mxu0 0
        %1536 = vmatpush1.bf16.msra.mxu0 %v1527
        %1537 = vmatprep.subr.bf16.mxu0 0
        %1538 = vmatpush1.bf16.msra.mxu0 %v1528
        %1539 = vmatprep.subr.bf16.mxu0 0
        %1540 = vmatpush1.bf16.msra.mxu0 %v1529
        %1541 = vmatprep.subr.bf16.mxu0 0
        %1542 = vmatpush1.bf16.msra.mxu0 %v1530
        %1543 = vmatprep.subr.bf16.mxu0 0
        %1544 = vmatpush1.bf16.msra.mxu0 %v1531
        %1545 = vmatprep.subr.bf16.mxu0 0
        %1546 = vmatpush1.bf16.msra.mxu0 %v1532
        %1547 = vmatprep.subr.bf16.mxu0 0
        %1548 = vmatpush1.bf16.msra.mxu0 %v1533
        %1549 = vmatprep.subr.bf16.mxu0 0
        %1550 = vmatpush1.bf16.msra.mxu0 %v1534
        %1551 = vmatprep.subr.bf16.mxu0 0
        %1552 = vmatpush1.bf16.msra.mxu0 0
        %1553 = vmatprep.subr.bf16.mxu0 0
        %1554 = vmatpush1.bf16.msra.mxu0 0
        %1555 = vmatprep.subr.bf16.mxu0 0
        %1556 = vmatpush1.bf16.msra.mxu0 0
        %1557 = vmatprep.subr.bf16.mxu0 0
        %1558 = vmatpush1.bf16.msra.mxu0 0
        %1559 = vmatprep.subr.bf16.mxu0 0
        %1560 = vmatpush1.bf16.msra.mxu0 0
        %1561 = vmatprep.subr.bf16.mxu0 0
        %1562 = vmatpush1.bf16.msra.mxu0 0
        %1563 = vmatprep.subr.bf16.mxu0 0
        %1564 = vmatpush1.bf16.msra.mxu0 0
        %1565 = vmatprep.subr.bf16.mxu0 0
        %1566 = vmatpush1.bf16.msra.mxu0 0
        %1567 = vmatprep.mubr.bf16.mxu0 0
        %1568 = vmatmul.mubr.bf16.gmra.mrb[0].mxu0 %v1447
        %v1569 = vpop.f32.mrb[0].mxu0
        %v1570 = vadd.f32 0.0, %v1569
        %v1571 = vpop.f32.mrb[0].mxu0
        %v1572 = vpop.f32.mrb[0].mxu0
        %v1573 = vadd.f32 0.0, %v1572
        %v1574 = vpop.f32.mrb[0].mxu0
        %1575 = vmatprep.mubr.bf16.mxu0 0
        %1576 = vmatmul.mubr.bf16.gmra.mrb[0].mxu0 %v1448
        %v1577 = vpop.f32.mrb[0].mxu0
        %v1578 = vadd.f32 0.0, %v1577
        %v1579 = vpop.f32.mrb[0].mxu0
        %v1580 = vpop.f32.mrb[0].mxu0
        %v1581 = vadd.f32 0.0, %v1580
        %v1582 = vpop.f32.mrb[0].mxu0
        %1583 = vmatprep.mubr.bf16.mxu0 0
        %1584 = vmatmul.mubr.bf16.gmra.mrb[0].mxu0 %v1449
        %v1585 = vpop.f32.mrb[0].mxu0
        %v1586 = vadd.f32 0.0, %v1585
        %v1587 = vpop.f32.mrb[0].mxu0
        %v1588 = vpop.f32.mrb[0].mxu0
        %v1589 = vadd.f32 0.0, %v1588
        %v1590 = vpop.f32.mrb[0].mxu0
        %1591 = vmatprep.mubr.bf16.mxu0 0
        %1592 = vmatmul.mubr.bf16.gmra.mrb[0].mxu0 %v1450
        %v1593 = vpop.f32.mrb[0].mxu0
        %v1594 = vadd.f32 0.0, %v1593
        %v1595 = vpop.f32.mrb[0].mxu0
        %v1596 = vpop.f32.mrb[0].mxu0
        %v1597 = vadd.f32 0.0, %v1596
        %v1598 = vpop.f32.mrb[0].mxu0
        %1599 = vmatprep.mubr.bf16.mxu0 0
        %1600 = vmatmul.mubr.bf16.gmra.mrb[0].mxu0 %v1451
        %v1601 = vpop.f32.mrb[0].mxu0
        %v1602 = vadd.f32 0.0, %v1601
        %v1603 = vpop.f32.mrb[0].mxu0
        %v1604 = vpop.f32.mrb[0].mxu0
        %v1605 = vadd.f32 0.0, %v1604
        %v1606 = vpop.f32.mrb[0].mxu0
        %1607 = vmatprep.mubr.bf16.mxu0 0
        %1608 = vmatmul.mubr.bf16.gmra.mrb[0].mxu0 %v1452
        %v1609 = vpop.f32.mrb[0].mxu0
        %v1610 = vadd.f32 0.0, %v1609
        %v1611 = vpop.f32.mrb[0].mxu0
        %v1612 = vpop.f32.mrb[0].mxu0
        %v1613 = vadd.f32 0.0, %v1612
        %v1614 = vpop.f32.mrb[0].mxu0
        %1615 = vmatprep.mubr.bf16.mxu0 0
        %1616 = vmatmul.mubr.bf16.gmra.mrb[0].mxu0 %v1453
        %v1617 = vpop.f32.mrb[0].mxu0
        %v1618 = vadd.f32 0.0, %v1617
        %v1619 = vpop.f32.mrb[0].mxu0
        %v1620 = vpop.f32.mrb[0].mxu0
        %v1621 = vadd.f32 0.0, %v1620
        %v1622 = vpop.f32.mrb[0].mxu0
        %1623 = vmatprep.mubr.bf16.mxu0 0
        %1624 = vmatmul.mubr.bf16.gmra.mrb[0].mxu0 %v1454
        %v1625 = vpop.f32.mrb[0].mxu0
        %v1626 = vadd.f32 0.0, %v1625
        %v1627 = vpop.f32.mrb[0].mxu0
        %v1628 = vpop.f32.mrb[0].mxu0
        %v1629 = vadd.f32 0.0, %v1628
        %v1630 = vpop.f32.mrb[0].mxu0
        %1631 = vdwg.mxu0
        %v1632 = vpack.c.bf16 %v1573, %v1570
        %v1633 = vpack.c.bf16 %v1581, %v1578
        %v1634 = vpack.c.bf16 %v1589, %v1586
        %v1635 = vpack.c.bf16 %v1597, %v1594
        %v1636 = vpack.c.bf16 %v1605, %v1602
        %v1637 = vpack.c.bf16 %v1613, %v1610
        %v1638 = vpack.c.bf16 %v1621, %v1618
        %v1639 = vpack.c.bf16 %v1629, %v1626
        %v1640 = vld [vmem:[#allocation12] sm:$0xf]
        %v1641 = vld [vmem:[#allocation12 + $0x4] sm:$0xf]
        %v1642 = vld [vmem:[#allocation12 + $0x8] sm:$0xf]
        %v1643 = vld [vmem:[#allocation12 + $0xc] sm:$0xf]
        %v1644 = vld [vmem:[#allocation12 + $0x10] sm:$0xf]
        %v1645 = vld [vmem:[#allocation12 + $0x14] sm:$0xf]
        %v1646 = vld [vmem:[#allocation12 + $0x18] sm:$0xf]
        %v1647 = vld [vmem:[#allocation12 + $0x1c] sm:$0xf]
        %v1648 = vld [vmem:[#allocation12 + $0x20] sm:$0xf]
        %v1649 = vld [vmem:[#allocation12 + $0x24] sm:$0xf]
        %v1650 = vld [vmem:[#allocation12 + $0x28] sm:$0xf]
        %v1651 = vld [vmem:[#allocation12 + $0x2c] sm:$0xf]
        %v1652 = vld [vmem:[#allocation12 + $0x30] sm:$0xf]
        %v1653 = vld [vmem:[#allocation12 + $0x34] sm:$0xf]
        %v1654 = vld [vmem:[#allocation12 + $0x38] sm:$0xf]
        %v1655 = vld [vmem:[#allocation12 + $0x3c] sm:$0xf]
        %v1656 = vld [vmem:[%s7] sm:$0x1]
        %v1658 = vlaneseq
        %v1659 = vshrl.u32 %v1658, 7
        %v1660 = vsub.s32 0, %v1659
        %v1661 = vrot.slane %v1656, %v1660
        %v1679 = vunpack.c.l.b16 %v1640
        %v1680 = vunpack.c.l.b16 %v1641
        %v1681 = vunpack.c.l.b16 %v1642
        %v1682 = vunpack.c.l.b16 %v1643
        %v1683 = vunpack.c.l.b16 %v1644
        %v1684 = vunpack.c.l.b16 %v1645
        %v1685 = vunpack.c.l.b16 %v1646
        %v1686 = vunpack.c.l.b16 %v1647
        %v1687 = vunpack.c.l.b16 %v1648
        %v1688 = vunpack.c.l.b16 %v1649
        %v1689 = vunpack.c.l.b16 %v1650
        %v1690 = vunpack.c.l.b16 %v1651
        %v1691 = vunpack.c.l.b16 %v1652
        %v1692 = vunpack.c.l.b16 %v1653
        %v1693 = vunpack.c.l.b16 %v1654
        %v1694 = vunpack.c.l.b16 %v1655
        %v1695 = vpack.c.b16 %v1680, %v1679
        %v1696 = vpack.c.b16 %v1682, %v1681
        %v1697 = vpack.c.b16 %v1684, %v1683
        %v1698 = vpack.c.b16 %v1686, %v1685
        %v1699 = vpack.c.b16 %v1688, %v1687
        %v1700 = vpack.c.b16 %v1690, %v1689
        %v1701 = vpack.c.b16 %v1692, %v1691
        %v1702 = vpack.c.b16 %v1694, %v1693
        %1711 = vmatprep.subr.bf16.mxu0 0
        %1712 = vmatpush1.bf16.msra.mxu0 %v1695
        %1713 = vmatprep.subr.bf16.mxu0 0
        %1714 = vmatpush1.bf16.msra.mxu0 %v1696
        %1715 = vmatprep.subr.bf16.mxu0 0
        %1716 = vmatpush1.bf16.msra.mxu0 %v1697
        %1717 = vmatprep.subr.bf16.mxu0 0
        %1718 = vmatpush1.bf16.msra.mxu0 %v1698
        %1719 = vmatprep.subr.bf16.mxu0 0
        %1720 = vmatpush1.bf16.msra.mxu0 %v1699
        %1721 = vmatprep.subr.bf16.mxu0 0
        %1722 = vmatpush1.bf16.msra.mxu0 %v1700
        %1723 = vmatprep.subr.bf16.mxu0 0
        %1724 = vmatpush1.bf16.msra.mxu0 %v1701
        %1725 = vmatprep.subr.bf16.mxu0 0
        %1726 = vmatpush1.bf16.msra.mxu0 %v1702
        %1727 = vmatprep.subr.bf16.mxu0 0
        %1728 = vmatpush1.bf16.msra.mxu0 0
        %1729 = vmatprep.subr.bf16.mxu0 0
        %1730 = vmatpush1.bf16.msra.mxu0 0
        %1731 = vmatprep.subr.bf16.mxu0 0
        %1732 = vmatpush1.bf16.msra.mxu0 0
        %1733 = vmatprep.subr.bf16.mxu0 0
        %1734 = vmatpush1.bf16.msra.mxu0 0
        %1735 = vmatprep.subr.bf16.mxu0 0
        %1736 = vmatpush1.bf16.msra.mxu0 0
        %1737 = vmatprep.subr.bf16.mxu0 0
        %1738 = vmatpush1.bf16.msra.mxu0 0
        %1739 = vmatprep.subr.bf16.mxu0 0
        %1740 = vmatpush1.bf16.msra.mxu0 0
        %1741 = vmatprep.subr.bf16.mxu0 0
        %1742 = vmatpush1.bf16.msra.mxu0 0
        %1743 = vmatprep.mubr.bf16.mxu0 0
        %1744 = vmatmul.mubr.bf16.gmra.mrb[0].mxu0 %v1632
        %v1745 = vpop.f32.mrb[0].mxu0
        %v1746 = vadd.f32 %v1661, %v1745
        %v1747 = vpop.f32.mrb[0].mxu0
        %v1748 = vpop.f32.mrb[0].mxu0
        %v1749 = vadd.f32 %v1661, %v1748
        %v1750 = vpop.f32.mrb[0].mxu0
        %1751 = vmatprep.mubr.bf16.mxu0 0
        %1752 = vmatmul.mubr.bf16.gmra.mrb[0].mxu0 %v1633
        %v1753 = vpop.f32.mrb[0].mxu0
        %v1754 = vadd.f32 %v1661, %v1753
        %v1755 = vpop.f32.mrb[0].mxu0
        %v1756 = vpop.f32.mrb[0].mxu0
        %v1757 = vadd.f32 %v1661, %v1756
        %v1758 = vpop.f32.mrb[0].mxu0
        %1759 = vmatprep.mubr.bf16.mxu0 0
        %1760 = vmatmul.mubr.bf16.gmra.mrb[0].mxu0 %v1634
        %v1761 = vpop.f32.mrb[0].mxu0
        %v1762 = vadd.f32 %v1661, %v1761
        %v1763 = vpop.f32.mrb[0].mxu0
        %v1764 = vpop.f32.mrb[0].mxu0
        %v1765 = vadd.f32 %v1661, %v1764
        %v1766 = vpop.f32.mrb[0].mxu0
        %1767 = vmatprep.mubr.bf16.mxu0 0
        %1768 = vmatmul.mubr.bf16.gmra.mrb[0].mxu0 %v1635
        %v1769 = vpop.f32.mrb[0].mxu0
        %v1770 = vadd.f32 %v1661, %v1769
        %v1771 = vpop.f32.mrb[0].mxu0
        %v1772 = vpop.f32.mrb[0].mxu0
        %v1773 = vadd.f32 %v1661, %v1772
        %v1774 = vpop.f32.mrb[0].mxu0
        %1775 = vmatprep.mubr.bf16.mxu0 0
        %1776 = vmatmul.mubr.bf16.gmra.mrb[0].mxu0 %v1636
        %v1777 = vpop.f32.mrb[0].mxu0
        %v1778 = vadd.f32 %v1661, %v1777
        %v1779 = vpop.f32.mrb[0].mxu0
        %v1780 = vpop.f32.mrb[0].mxu0
        %v1781 = vadd.f32 %v1661, %v1780
        %v1782 = vpop.f32.mrb[0].mxu0
        %1783 = vmatprep.mubr.bf16.mxu0 0
        %1784 = vmatmul.mubr.bf16.gmra.mrb[0].mxu0 %v1637
        %v1785 = vpop.f32.mrb[0].mxu0
        %v1786 = vadd.f32 %v1661, %v1785
        %v1787 = vpop.f32.mrb[0].mxu0
        %v1788 = vpop.f32.mrb[0].mxu0
        %v1789 = vadd.f32 %v1661, %v1788
        %v1790 = vpop.f32.mrb[0].mxu0
        %1791 = vmatprep.mubr.bf16.mxu0 0
        %1792 = vmatmul.mubr.bf16.gmra.mrb[0].mxu0 %v1638
        %v1793 = vpop.f32.mrb[0].mxu0
        %v1794 = vadd.f32 %v1661, %v1793
        %v1795 = vpop.f32.mrb[0].mxu0
        %v1796 = vpop.f32.mrb[0].mxu0
        %v1797 = vadd.f32 %v1661, %v1796
        %v1798 = vpop.f32.mrb[0].mxu0
        %1799 = vmatprep.mubr.bf16.mxu0 0
        %1800 = vmatmul.mubr.bf16.gmra.mrb[0].mxu0 %v1639
        %v1801 = vpop.f32.mrb[0].mxu0
        %v1802 = vadd.f32 %v1661, %v1801
        %v1803 = vpop.f32.mrb[0].mxu0
        %v1804 = vpop.f32.mrb[0].mxu0
        %v1805 = vadd.f32 %v1661, %v1804
        %v1806 = vpop.f32.mrb[0].mxu0
        %1807 = vdwg.mxu0
        %1808 = vst [vmem:[%s491] sm:$0xff] %v1746
        %1809 = vst [vmem:[%s491 + $0x8] sm:$0xff] %v1749
        %1810 = vst [vmem:[%s491 + $0x10] sm:$0xff] %v1754
        %1811 = vst [vmem:[%s491 + $0x18] sm:$0xff] %v1757
        %1812 = vst [vmem:[%s491 + $0x20] sm:$0xff] %v1762
        %1813 = vst [vmem:[%s491 + $0x28] sm:$0xff] %v1765
        %1814 = vst [vmem:[%s491 + $0x30] sm:$0xff] %v1770
        %1815 = vst [vmem:[%s491 + $0x38] sm:$0xff] %v1773
        %1816 = vst [vmem:[%s491 + $0x40] sm:$0xff] %v1778
        %1817 = vst [vmem:[%s491 + $0x48] sm:$0xff] %v1781
        %1818 = vst [vmem:[%s491 + $0x50] sm:$0xff] %v1786
        %1819 = vst [vmem:[%s491 + $0x58] sm:$0xff] %v1789
        %1820 = vst [vmem:[%s491 + $0x60] sm:$0xff] %v1794
        %1821 = vst [vmem:[%s491 + $0x68] sm:$0xff] %v1797
        %1822 = vst [vmem:[%s491 + $0x70] sm:$0xff] %v1802
        %1823 = vst [vmem:[%s491 + $0x78] sm:$0xff] %v1805
        %s1824 = sand.u32 %s246, 1
        %s1825 = scalar_lea.sflag [#allocation6], %s1824
        %s1826 = sand.u32 %s246, 1
        %s1827 = smul.addr %s1826, 128
        %s1828 = scalar_lea.vmem [#allocation13], %s1827
        %s1829 = sand.u32 %s274, 1
        %s1830 = scalar_lea.sflag [#allocation15], %s1829
        %s1831 = sand.u32 %s274, 1
        %s1832 = smul.addr %s1831, 64
        %s1833 = scalar_lea.vmem [#allocation14], %s1832
        // Predicated region
        $region77: #{tpu_custom_call.1} parent=51 // pred_check
          %p1834 = pneg %p256
        $region78: #{tpu_custom_call.1} parent=51 // pred_check_branch
          %1836 = sbr.rel (%p1834) target = $region80
        $region79: #{tpu_custom_call.1} parent=51 // pred_region
          %s1837 = smul.u32 16, %s39
          %s1839 = ssub.s32 2048, 2048
          %1840 = vsyncadd %s1825, %s1839
          %s1841 = smul.addr %s38, 16
          %s1842 = sadd.s32 %s1837, %s1841
          %s1843 = smul.addr %s1842, 128
          %s1844 = scalar_lea.hbm %s8, %s1843
          %s1845 = sshll.u32 %s1828, 4
          %s1846 = int_to_ptr.vmem [resolvable:$true] %s1845
          %1851 = dma.vmem_to_hbm [thread:$0]  %s1846, 2048, %s1844, %s1825, 128, 128, 8
        $region80: #{tpu_custom_call.1} parent=51 // pred_fallthru
          _
        // Predicated region
        $region81: #{tpu_custom_call.1} parent=51 // pred_check
          %p1852 = pneg %p284
        $region82: #{tpu_custom_call.1} parent=51 // pred_check_branch
          %1854 = sbr.rel (%p1852) target = $region84
        $region83: #{tpu_custom_call.1} parent=51 // pred_region
          %s1855 = smul.u32 16, %s39
          %s1857 = ssub.s32 1024, 1024
          %1858 = vsyncadd %s1830, %s1857
          %s1859 = smul.addr %s38, 16
          %s1860 = sadd.s32 %s1855, %s1859
          %s1861 = smul.addr %s1860, 64
          %s1862 = scalar_lea.hbm %s9, %s1861
          %s1863 = sshll.u32 %s1833, 4
          %s1864 = int_to_ptr.vmem [resolvable:$true] %s1863
          %1869 = dma.vmem_to_hbm [thread:$0]  %s1864, 1024, %s1862, %s1830, 64, 64, 4
        $region84: #{tpu_custom_call.1} parent=51 // pred_fallthru
          _
      $region52: #{tpu_custom_call.1} parent=5 // pred_fallthru
        _
      %p1870 = scmp.le.s32.totalorder 2, %s29
      // Predicated region
      $region85: #{tpu_custom_call.1} parent=5 // pred_check
        %p1871 = pneg %p1870
      $region86: #{tpu_custom_call.1} parent=5 // pred_check_branch
        %1873 = sbr.rel (%p1871) target = $region88
      $region87: #{tpu_custom_call.1} parent=5 // pred_region
        %s1874 = ssub.s32 %s29, 2
        // Predicated region
        $region89: #{tpu_custom_call.1} parent=87 // pred_check
          %p1875 = pneg %p262
        $region90: #{tpu_custom_call.1} parent=87 // pred_check_branch
          %1877 = sbr.rel (%p1875) target = $region92
        $region91: #{tpu_custom_call.1} parent=87 // pred_region
          %s1878 = sand.u32 %s247, 1
          %s1879 = scalar_lea.sflag [#allocation6], %s1878
          %s1880 = sand.u32 %s247, 1
          %s1881 = smul.addr %s1880, 128
          %s1882 = scalar_lea.vmem [#allocation13], %s1881
          %1883 = dma.done %s1879, 2048
        $region92: #{tpu_custom_call.1} parent=87 // pred_fallthru
          _
        // Predicated region
        $region93: #{tpu_custom_call.1} parent=87 // pred_check
          %p1884 = pneg %p290
        $region94: #{tpu_custom_call.1} parent=87 // pred_check_branch
          %1886 = sbr.rel (%p1884) target = $region96
        $region95: #{tpu_custom_call.1} parent=87 // pred_region
          %s1887 = sand.u32 %s275, 1
          %s1888 = scalar_lea.sflag [#allocation15], %s1887
          %s1889 = sand.u32 %s275, 1
          %s1890 = smul.addr %s1889, 64
          %s1891 = scalar_lea.vmem [#allocation14], %s1890
          %1892 = dma.done %s1888, 1024
        $region96: #{tpu_custom_call.1} parent=87 // pred_fallthru
          _
      $region88: #{tpu_custom_call.1} parent=5 // pred_fallthru
        _
    $region6: #{tpu_custom_call.1} parent=1 // loop_footer
      %s33 = sadd.s32 1, %s29
    $region7: #{tpu_custom_call.1} parent=1 // loop_footer_branch
      %28 = sbr.rel target = $region3
    $region8: #{tpu_custom_call.1} parent=1 // loop_exit
      _
    %1893 = vsyncpa [#allocation5], 1
    %s1894 = scalar_lea.sflag [#allocation5], 1
    %1895 = vsyncpa %s1894, 1
    %1896 = vsyncpa [#allocation8], 1
    %s1897 = scalar_lea.sflag [#allocation8], 1
    %1898 = vsyncpa %s1897, 1
    %1899 = vsyncpa [#allocation11], 1
    %1900 = vsyncpa [#allocation6], 1
    %s1901 = scalar_lea.sflag [#allocation6], 1
    %1902 = vsyncpa %s1901, 1
    %1903 = vsyncpa [#allocation15], 1
    %s1904 = scalar_lea.sflag [#allocation15], 1
    %1905 = vsyncpa %s1904, 1

</llo_original>
